<compile_context>
chip_gen: v7x
topology: tpu7x:2x2x1
jax: 0.10.0
libtpu: 0.0.40
codegen_flags: <defaults>
</compile_context>

<pallas_src>
import math
import functools
import numpy as np
import jax
import jax.numpy as jnp
from jax.experimental import pallas as pl
from jax.experimental.pallas import tpu as pltpu


def _round_up(x, m):
    return (x + m - 1) // m * m


def _vmem_budget():
    """(vmem_limit_bytes, default flattened rows per tile) by TPU generation."""
    try:
        cap = int(pltpu.get_tpu_info().vmem_capacity_bytes)
    except Exception:
        cap = 64 * 1024 * 1024
    if cap >= 100 * 1024 * 1024:          # v5e / v6e: 128 MiB VMEM per core
        return 100 * 1024 * 1024, 4096
    return 48 * 1024 * 1024, 1024         # v7x: 64 MiB per core -> stay well under


def _cond_styled_conv_kernel(
    xw_ref,      # (1, 1, Mw, Cin)      bf16  flattened padded input window (with halo)
    w_ref,       # (1, K*K, Cin, Cout)  bf16  prefolded (scale*style*demod) weight, per batch
    noise_ref,   # (1, 1, M, 1)         f32   noise * injection weight, this tile
    bias_ref,    # (1, Cout)            f32   FusedLeakyReLU bias
    out_ref,     # (1, 1, M, Cout)      f32
    *, M, K, Wp,
):
    # Value-carried accumulation over the K*K taps: partial sums never round-trip
    # through a VMEM accumulator; each tap is one bf16 MXU matmul with f32 accumulate.
    acc = None
    for ki in range(K):
        for kj in range(K):
            tap = ki * K + kj
            a = xw_ref[0, 0, pl.ds(ki * Wp + kj, M), :]          # (M, Cin) bf16, static offset
            contrib = jnp.dot(a, w_ref[0, tap],
                              preferred_element_type=jnp.float32)
            acc = contrib if acc is None else acc + contrib

    # Epilogue: CondInjection (noise already scaled by its weight) + FusedLeakyReLU:
    # sqrt(2) * leaky_relu(x + bias, 0.2)
    y = acc + noise_ref[0, 0] + bias_ref[...]
    y = jnp.where(y >= 0.0, y, 0.2 * y) * 1.4142135623730951
    out_ref[0, 0] = y.astype(out_ref.dtype)


def cond_styled_conv(x_nchw, style, labels, noise_nchw, params, *, max_tile_rows=None):
    """Fused forward of CondStyledConv.

    x: (B, Cin, H, W), style: (B, S), noise: (B, 1, H, W).  Returns (B, Cout, H, W).
    `labels` only feed a dead `cond` tensor in the reference forward -> ignored.
    """
    del labels
    B, Cin, H, W = x_nchw.shape
    W_conv = params["conv_weight"]                       # (Cout, Cin, K, K)
    Cout, _, K, _ = W_conv.shape
    S = params["mod_weight"].shape[1]

    conv_scale = 1.0 / math.sqrt(Cin * K * K)
    mod_scale = 1.0 / math.sqrt(S)                       # EqualLinear scale, lr_mul = 1
    pad = K // 2

    vmem_limit, default_rows = _vmem_budget()
    if max_tile_rows is None:
        max_tile_rows = default_rows

    # Width padding: conv halo + round up to a multiple of 16 (bf16 sublane pack)
    # so the per-tap slice offsets ki*Wp are aligned and M is 16-aligned.
    Wp = _round_up(W + 2 * pad, 16)

    # Spatial tiling: Th output rows per tile (halo via overlapping windows).
    # Ragged last tile handled by padding H up -- no divisibility requirement.
    Th = max(1, min(H, max_tile_rows // Wp))
    nT = -(-H // Th)
    Hpad = nT * Th
    M = Th * Wp                                          # flattened output rows per tile
    Mw = _round_up((Th + 2 * pad) * Wp + 2 * pad, 16)    # flattened input-window length

    # --- tiny per-batch precompute, hoisted out of the kernel ----------------------
    s = style.astype(jnp.float32) @ (params["mod_weight"].astype(jnp.float32) * mod_scale).T
    s = s + params["mod_bias"].astype(jnp.float32)                        # (B, Cin)
    w_scaled = conv_scale * W_conv.astype(jnp.float32)                    # (Cout, Cin, K, K)
    wsq = jnp.sum(w_scaled * w_scaled, axis=(2, 3)).T                     # (Cin, Cout)
    demod = jax.lax.rsqrt((s * s) @ wsq + 1e-8)                           # (B, Cout)
    w_taps = jnp.transpose(w_scaled, (2, 3, 1, 0)).reshape(K * K, Cin, Cout)
    # Prefold modulation + demodulation into bf16 MXU weights: (B, K*K, Cin, Cout).
    w_folded = (w_taps[None] * s[:, None, :, None] * demod[:, None, None, :]
                ).astype(jnp.bfloat16)

    # --- input: NHWC, cast to bf16 early, pad (halo + height/width alignment),
    #     flatten rows, cut overlapping halo windows ---------------------------------
    x_nhwc = jnp.transpose(x_nchw, (0, 2, 3, 1)).astype(jnp.bfloat16)
    x_pad = jnp.pad(x_nhwc, ((0, 0),
                             (pad, pad + (Hpad - H)),
                             (pad, Wp - W - pad),
                             (0, 0)))
    x_flat = x_pad.reshape(B, (Hpad + 2 * pad) * Wp, Cin)
    total = (nT - 1) * Th * Wp + Mw
    x_flat = jnp.pad(x_flat, ((0, 0), (0, total - (Hpad + 2 * pad) * Wp), (0, 0)))
    x_tiles = jnp.stack(
        [x_flat[:, t * Th * Wp: t * Th * Wp + Mw, :] for t in range(nT)], axis=1)
    # (B, nT, Mw, Cin) bf16

    # --- noise * injection weight, same flattened (width-padded) layout ------------
    noise_hw = jnp.transpose(noise_nchw, (0, 2, 3, 1))[..., 0].astype(jnp.float32)  # (B, H, W)
    noise_hw = params["noise_weight"].reshape(()) * noise_hw
    noise_hw = jnp.pad(noise_hw, ((0, 0), (0, Hpad - H), (0, Wp - W)))
    noise_tiles = noise_hw.reshape(B, nT, M, 1)

    abias = params["act_bias"].reshape(1, Cout).astype(jnp.float32)

    kernel = functools.partial(_cond_styled_conv_kernel, M=M, K=K, Wp=Wp)

    out_tiles = pl.pallas_call(
        kernel,
        out_shape=jax.ShapeDtypeStruct((B, nT, M, Cout), jnp.float32),
        grid=(B, nT),
        in_specs=[
            pl.BlockSpec((1, 1, Mw, Cin), lambda b, t: (b, t, 0, 0)),
            # weight block index only depends on b -> not re-fetched across the t axis
            pl.BlockSpec((1, K * K, Cin, Cout), lambda b, t: (b, 0, 0, 0)),
            pl.BlockSpec((1, 1, M, 1), lambda b, t: (b, t, 0, 0)),
            pl.BlockSpec((1, Cout), lambda b, t: (0, 0)),
        ],
        out_specs=pl.BlockSpec((1, 1, M, Cout), lambda b, t: (b, t, 0, 0)),
        compiler_params=pltpu.CompilerParams(
            dimension_semantics=("parallel", "parallel"),  # keeps both v7x TCs busy
            vmem_limit_bytes=vmem_limit,
        ),
    )(x_tiles, w_folded, noise_tiles, abias)

    # Strip the width/height padding garbage and go back to NCHW.
    out = out_tiles.reshape(B, Hpad, Wp, Cout)[:, :H, :W, :]
    return jnp.transpose(out, (0, 3, 1, 2))


def ref_forward(x, style, noise, params):
    """Pure-JAX f32 reference replicating the PyTorch forward exactly (NCHW)."""
    B, Cin, H, W = x.shape
    W_conv = params["conv_weight"]
    Cout, _, K, _ = W_conv.shape
    S = params["mod_weight"].shape[1]
    conv_scale = 1.0 / math.sqrt(Cin * K * K)
    mod_scale = 1.0 / math.sqrt(S)
    s = style @ (params["mod_weight"] * mod_scale).T + params["mod_bias"]
    weight = conv_scale * W_conv[None] * s[:, None, :, None, None]
    demod = jax.lax.rsqrt(jnp.sum(weight ** 2, axis=(2, 3, 4)) + 1e-8)
    weight = weight * demod[:, :, None, None, None]
    pad = K // 2
    outs = []
    for b in range(B):
        outs.append(jax.lax.conv_general_dilated(
            x[b:b + 1], weight[b], (1, 1), [(pad, pad), (pad, pad)],
            dimension_numbers=("NCHW", "OIHW", "NCHW")))
    o = jnp.concatenate(outs, axis=0)
    o = o + params["noise_weight"][0] * noise
    o = o + params["act_bias"].reshape(1, -1, 1, 1)
    o = jnp.where(o >= 0, o, 0.2 * o) * (2.0 ** 0.5)
    return o


if __name__ == "__main__":
    B, Cin, Cout, K, S, H, W = 2, 4, 8, 3, 32, 16, 16
    key = jax.random.PRNGKey(0)
    ks = jax.random.split(key, 7)

    # deterministic synthetic parameters (shapes from the module's __init__);
    # noise_weight / act_bias set nonzero so the fused injection+bias paths are tested.
    params = {
        "conv_weight": jax.random.normal(ks[0], (Cout, Cin, K, K), jnp.float32),
        "mod_weight": jax.random.normal(ks[1], (Cin, S), jnp.float32),     # EqualLinear(out=Cin, in=S)
        "mod_bias": jnp.ones((Cin,), jnp.float32),                         # bias_init = 1
        "noise_weight": jnp.full((1,), 0.3, jnp.float32),                  # CondInjection weight
        "act_bias": 0.1 * jax.random.normal(ks[6], (Cout,), jnp.float32),  # FusedLeakyReLU bias
    }

    x = jax.random.normal(ks[2], (B, Cin, H, W), jnp.float32)
    style = jax.random.normal(ks[3], (B, S), jnp.float32)
    labels = jax.random.randint(ks[4], (B,), 0, 10)
    # reference draws fresh noise when noise is None; we pass deterministic noise explicitly
    noise = jax.random.normal(ks[5], (B, 1, H, W), jnp.float32)

    # max_tile_rows=160 with Wp=32 -> Th=5, nT=4 (ragged last tile): exercises the
    # halo tiling + height-padding path
    out = cond_styled_conv(x, style, labels, noise, params, max_tile_rows=160)
    out = jax.block_until_ready(out)

    ref = ref_forward(x, style, noise, params)
    # bf16 MXU operands (f32 accumulation) -> tolerance loosened vs the f32 reference
    np.testing.assert_allclose(np.asarray(out), np.asarray(ref), rtol=5e-2, atol=5e-2)
    print("KERNEL_OK")
</pallas_src>

<mosaic_0001>
module attributes {stable_mosaic.version = 11 : i64} {
  func.func @_cond_styled_conv_kernel(%arg0: i32, %arg1: i32, %arg2: memref<1x1x240x4xbf16, #tpu.memory_space<vmem>>, %arg3: memref<1x9x4x8xbf16, #tpu.memory_space<vmem>>, %arg4: memref<1x1x160x1xf32, #tpu.memory_space<vmem>>, %arg5: memref<1x8xf32, #tpu.memory_space<vmem>>, %arg6: memref<1x1x160x8xf32, #tpu.memory_space<vmem>>) attributes {dimension_semantics = [#tpu.dimension_semantics<parallel>, #tpu.dimension_semantics<parallel>], iteration_bounds = array<i64: 2, 4>, scalar_prefetch = 0 : i64, scratch_operands = 0 : i64, tpu.core_type = #tpu.core_type<tc>, window_params = [{transform_indices = @transform_0, window_bounds = array<i64: 1, 1, 240, 4>}, {transform_indices = @transform_1, window_bounds = array<i64: 1, 9, 4, 8>}, {transform_indices = @transform_2, window_bounds = array<i64: 1, 1, 160, 1>}, {pipeline_mode = #tpu.pipeline_mode<synchronous>, transform_indices = @transform_3, window_bounds = array<i64: 1, 8>}, {transform_indices = @transform_4, window_bounds = array<i64: 1, 1, 160, 8>}]} {
    %c0 = arith.constant 0 : index
    %c0_0 = arith.constant 0 : index
    %c0_1 = arith.constant 0 : index
    %c0_2 = arith.constant 0 : index
    %0 = vector.load %arg2[%c0, %c0_0, %c0_1, %c0_2] : memref<1x1x240x4xbf16, #tpu.memory_space<vmem>>, vector<1x1x160x4xbf16>
    %1 = vector.shape_cast %0 : vector<1x1x160x4xbf16> to vector<160x4xbf16>
    %c0_3 = arith.constant 0 : index
    %c0_4 = arith.constant 0 : index
    %c0_5 = arith.constant 0 : index
    %c0_6 = arith.constant 0 : index
    %2 = vector.load %arg3[%c0_3, %c0_4, %c0_5, %c0_6] : memref<1x9x4x8xbf16, #tpu.memory_space<vmem>>, vector<1x1x4x8xbf16>
    %3 = vector.shape_cast %2 : vector<1x1x4x8xbf16> to vector<4x8xbf16>
    %cst = arith.constant dense<0.000000e+00> : vector<160x8xf32>
    %4 = tpu.matmul %1, %3, %cst {dimension_numbers = #tpu.dot_dimension_numbers<[1], [0], [0], [1], [0, 0, 1, 1], [], []>} : vector<160x4xbf16>, vector<4x8xbf16>, vector<160x8xf32> -> vector<160x8xf32>
    %c0_7 = arith.constant 0 : index
    %c0_8 = arith.constant 0 : index
    %c1 = arith.constant 1 : index
    %c0_9 = arith.constant 0 : index
    %5 = vector.load %arg2[%c0_7, %c0_8, %c1, %c0_9] : memref<1x1x240x4xbf16, #tpu.memory_space<vmem>>, vector<1x1x160x4xbf16>
    %6 = vector.shape_cast %5 : vector<1x1x160x4xbf16> to vector<160x4xbf16>
    %c0_10 = arith.constant 0 : index
    %c1_11 = arith.constant 1 : index
    %c0_12 = arith.constant 0 : index
    %c0_13 = arith.constant 0 : index
    %7 = vector.load %arg3[%c0_10, %c1_11, %c0_12, %c0_13] : memref<1x9x4x8xbf16, #tpu.memory_space<vmem>>, vector<1x1x4x8xbf16>
    %8 = vector.shape_cast %7 : vector<1x1x4x8xbf16> to vector<4x8xbf16>
    %cst_14 = arith.constant dense<0.000000e+00> : vector<160x8xf32>
    %9 = tpu.matmul %6, %8, %cst_14 {dimension_numbers = #tpu.dot_dimension_numbers<[1], [0], [0], [1], [0, 0, 1, 1], [], []>} : vector<160x4xbf16>, vector<4x8xbf16>, vector<160x8xf32> -> vector<160x8xf32>
    %10 = arith.addf %4, %9 : vector<160x8xf32>
    %c0_15 = arith.constant 0 : index
    %c0_16 = arith.constant 0 : index
    %c2 = arith.constant 2 : index
    %c0_17 = arith.constant 0 : index
    %11 = vector.load %arg2[%c0_15, %c0_16, %c2, %c0_17] : memref<1x1x240x4xbf16, #tpu.memory_space<vmem>>, vector<1x1x160x4xbf16>
    %12 = vector.shape_cast %11 : vector<1x1x160x4xbf16> to vector<160x4xbf16>
    %c0_18 = arith.constant 0 : index
    %c2_19 = arith.constant 2 : index
    %c0_20 = arith.constant 0 : index
    %c0_21 = arith.constant 0 : index
    %13 = vector.load %arg3[%c0_18, %c2_19, %c0_20, %c0_21] : memref<1x9x4x8xbf16, #tpu.memory_space<vmem>>, vector<1x1x4x8xbf16>
    %14 = vector.shape_cast %13 : vector<1x1x4x8xbf16> to vector<4x8xbf16>
    %cst_22 = arith.constant dense<0.000000e+00> : vector<160x8xf32>
    %15 = tpu.matmul %12, %14, %cst_22 {dimension_numbers = #tpu.dot_dimension_numbers<[1], [0], [0], [1], [0, 0, 1, 1], [], []>} : vector<160x4xbf16>, vector<4x8xbf16>, vector<160x8xf32> -> vector<160x8xf32>
    %16 = arith.addf %10, %15 : vector<160x8xf32>
    %c0_23 = arith.constant 0 : index
    %c0_24 = arith.constant 0 : index
    %c32 = arith.constant 32 : index
    %c0_25 = arith.constant 0 : index
    %17 = vector.load %arg2[%c0_23, %c0_24, %c32, %c0_25] : memref<1x1x240x4xbf16, #tpu.memory_space<vmem>>, vector<1x1x160x4xbf16>
    %18 = vector.shape_cast %17 : vector<1x1x160x4xbf16> to vector<160x4xbf16>
    %c0_26 = arith.constant 0 : index
    %c3 = arith.constant 3 : index
    %c0_27 = arith.constant 0 : index
    %c0_28 = arith.constant 0 : index
    %19 = vector.load %arg3[%c0_26, %c3, %c0_27, %c0_28] : memref<1x9x4x8xbf16, #tpu.memory_space<vmem>>, vector<1x1x4x8xbf16>
    %20 = vector.shape_cast %19 : vector<1x1x4x8xbf16> to vector<4x8xbf16>
    %cst_29 = arith.constant dense<0.000000e+00> : vector<160x8xf32>
    %21 = tpu.matmul %18, %20, %cst_29 {dimension_numbers = #tpu.dot_dimension_numbers<[1], [0], [0], [1], [0, 0, 1, 1], [], []>} : vector<160x4xbf16>, vector<4x8xbf16>, vector<160x8xf32> -> vector<160x8xf32>
    %22 = arith.addf %16, %21 : vector<160x8xf32>
    %c0_30 = arith.constant 0 : index
    %c0_31 = arith.constant 0 : index
    %c33 = arith.constant 33 : index
    %c0_32 = arith.constant 0 : index
    %23 = vector.load %arg2[%c0_30, %c0_31, %c33, %c0_32] : memref<1x1x240x4xbf16, #tpu.memory_space<vmem>>, vector<1x1x160x4xbf16>
    %24 = vector.shape_cast %23 : vector<1x1x160x4xbf16> to vector<160x4xbf16>
    %c0_33 = arith.constant 0 : index
    %c4 = arith.constant 4 : index
    %c0_34 = arith.constant 0 : index
    %c0_35 = arith.constant 0 : index
    %25 = vector.load %arg3[%c0_33, %c4, %c0_34, %c0_35] : memref<1x9x4x8xbf16, #tpu.memory_space<vmem>>, vector<1x1x4x8xbf16>
    %26 = vector.shape_cast %25 : vector<1x1x4x8xbf16> to vector<4x8xbf16>
    %cst_36 = arith.constant dense<0.000000e+00> : vector<160x8xf32>
    %27 = tpu.matmul %24, %26, %cst_36 {dimension_numbers = #tpu.dot_dimension_numbers<[1], [0], [0], [1], [0, 0, 1, 1], [], []>} : vector<160x4xbf16>, vector<4x8xbf16>, vector<160x8xf32> -> vector<160x8xf32>
    %28 = arith.addf %22, %27 : vector<160x8xf32>
    %c0_37 = arith.constant 0 : index
    %c0_38 = arith.constant 0 : index
    %c34 = arith.constant 34 : index
    %c0_39 = arith.constant 0 : index
    %29 = vector.load %arg2[%c0_37, %c0_38, %c34, %c0_39] : memref<1x1x240x4xbf16, #tpu.memory_space<vmem>>, vector<1x1x160x4xbf16>
    %30 = vector.shape_cast %29 : vector<1x1x160x4xbf16> to vector<160x4xbf16>
    %c0_40 = arith.constant 0 : index
    %c5 = arith.constant 5 : index
    %c0_41 = arith.constant 0 : index
    %c0_42 = arith.constant 0 : index
    %31 = vector.load %arg3[%c0_40, %c5, %c0_41, %c0_42] : memref<1x9x4x8xbf16, #tpu.memory_space<vmem>>, vector<1x1x4x8xbf16>
    %32 = vector.shape_cast %31 : vector<1x1x4x8xbf16> to vector<4x8xbf16>
    %cst_43 = arith.constant dense<0.000000e+00> : vector<160x8xf32>
    %33 = tpu.matmul %30, %32, %cst_43 {dimension_numbers = #tpu.dot_dimension_numbers<[1], [0], [0], [1], [0, 0, 1, 1], [], []>} : vector<160x4xbf16>, vector<4x8xbf16>, vector<160x8xf32> -> vector<160x8xf32>
    %34 = arith.addf %28, %33 : vector<160x8xf32>
    %c0_44 = arith.constant 0 : index
    %c0_45 = arith.constant 0 : index
    %c64 = arith.constant 64 : index
    %c0_46 = arith.constant 0 : index
    %35 = vector.load %arg2[%c0_44, %c0_45, %c64, %c0_46] : memref<1x1x240x4xbf16, #tpu.memory_space<vmem>>, vector<1x1x160x4xbf16>
    %36 = vector.shape_cast %35 : vector<1x1x160x4xbf16> to vector<160x4xbf16>
    %c0_47 = arith.constant 0 : index
    %c6 = arith.constant 6 : index
    %c0_48 = arith.constant 0 : index
    %c0_49 = arith.constant 0 : index
    %37 = vector.load %arg3[%c0_47, %c6, %c0_48, %c0_49] : memref<1x9x4x8xbf16, #tpu.memory_space<vmem>>, vector<1x1x4x8xbf16>
    %38 = vector.shape_cast %37 : vector<1x1x4x8xbf16> to vector<4x8xbf16>
    %cst_50 = arith.constant dense<0.000000e+00> : vector<160x8xf32>
    %39 = tpu.matmul %36, %38, %cst_50 {dimension_numbers = #tpu.dot_dimension_numbers<[1], [0], [0], [1], [0, 0, 1, 1], [], []>} : vector<160x4xbf16>, vector<4x8xbf16>, vector<160x8xf32> -> vector<160x8xf32>
    %40 = arith.addf %34, %39 : vector<160x8xf32>
    %c0_51 = arith.constant 0 : index
    %c0_52 = arith.constant 0 : index
    %c65 = arith.constant 65 : index
    %c0_53 = arith.constant 0 : index
    %41 = vector.load %arg2[%c0_51, %c0_52, %c65, %c0_53] : memref<1x1x240x4xbf16, #tpu.memory_space<vmem>>, vector<1x1x160x4xbf16>
    %42 = vector.shape_cast %41 : vector<1x1x160x4xbf16> to vector<160x4xbf16>
    %c0_54 = arith.constant 0 : index
    %c7 = arith.constant 7 : index
    %c0_55 = arith.constant 0 : index
    %c0_56 = arith.constant 0 : index
    %43 = vector.load %arg3[%c0_54, %c7, %c0_55, %c0_56] : memref<1x9x4x8xbf16, #tpu.memory_space<vmem>>, vector<1x1x4x8xbf16>
    %44 = vector.shape_cast %43 : vector<1x1x4x8xbf16> to vector<4x8xbf16>
    %cst_57 = arith.constant dense<0.000000e+00> : vector<160x8xf32>
    %45 = tpu.matmul %42, %44, %cst_57 {dimension_numbers = #tpu.dot_dimension_numbers<[1], [0], [0], [1], [0, 0, 1, 1], [], []>} : vector<160x4xbf16>, vector<4x8xbf16>, vector<160x8xf32> -> vector<160x8xf32>
    %46 = arith.addf %40, %45 : vector<160x8xf32>
    %c0_58 = arith.constant 0 : index
    %c0_59 = arith.constant 0 : index
    %c66 = arith.constant 66 : index
    %c0_60 = arith.constant 0 : index
    %47 = vector.load %arg2[%c0_58, %c0_59, %c66, %c0_60] : memref<1x1x240x4xbf16, #tpu.memory_space<vmem>>, vector<1x1x160x4xbf16>
    %48 = vector.shape_cast %47 : vector<1x1x160x4xbf16> to vector<160x4xbf16>
    %c0_61 = arith.constant 0 : index
    %c8 = arith.constant 8 : index
    %c0_62 = arith.constant 0 : index
    %c0_63 = arith.constant 0 : index
    %49 = vector.load %arg3[%c0_61, %c8, %c0_62, %c0_63] : memref<1x9x4x8xbf16, #tpu.memory_space<vmem>>, vector<1x1x4x8xbf16>
    %50 = vector.shape_cast %49 : vector<1x1x4x8xbf16> to vector<4x8xbf16>
    %cst_64 = arith.constant dense<0.000000e+00> : vector<160x8xf32>
    %51 = tpu.matmul %48, %50, %cst_64 {dimension_numbers = #tpu.dot_dimension_numbers<[1], [0], [0], [1], [0, 0, 1, 1], [], []>} : vector<160x4xbf16>, vector<4x8xbf16>, vector<160x8xf32> -> vector<160x8xf32>
    %52 = arith.addf %46, %51 : vector<160x8xf32>
    %c0_65 = arith.constant 0 : index
    %c0_66 = arith.constant 0 : index
    %c0_67 = arith.constant 0 : index
    %c0_68 = arith.constant 0 : index
    %53 = vector.load %arg4[%c0_65, %c0_66, %c0_67, %c0_68] : memref<1x1x160x1xf32, #tpu.memory_space<vmem>>, vector<1x1x160x1xf32>
    %54 = vector.shape_cast %53 : vector<1x1x160x1xf32> to vector<160x1xf32>
    %55 = vector.broadcast %54 : vector<160x1xf32> to vector<160x8xf32>
    %56 = arith.addf %52, %55 : vector<160x8xf32>
    %c0_69 = arith.constant 0 : index
    %c0_70 = arith.constant 0 : index
    %57 = vector.load %arg5[%c0_69, %c0_70] : memref<1x8xf32, #tpu.memory_space<vmem>>, vector<1x8xf32>
    %58 = vector.broadcast %57 : vector<1x8xf32> to vector<160x8xf32>
    %59 = arith.addf %56, %58 : vector<160x8xf32>
    %cst_71 = arith.constant 0.000000e+00 : f32
    %60 = vector.broadcast %cst_71 : f32 to vector<160x8xf32>
    %61 = arith.cmpf oge, %59, %60 : vector<160x8xf32>
    %cst_72 = arith.constant 2.000000e-01 : f32
    %62 = vector.broadcast %cst_72 : f32 to vector<160x8xf32>
    %63 = arith.mulf %62, %59 : vector<160x8xf32>
    %64 = arith.select %61, %59, %63 : vector<160x8xi1>, vector<160x8xf32>
    %cst_73 = arith.constant 1.41421354 : f32
    %65 = vector.broadcast %cst_73 : f32 to vector<160x8xf32>
    %66 = arith.mulf %64, %65 : vector<160x8xf32>
    %c0_74 = arith.constant 0 : index
    %c0_75 = arith.constant 0 : index
    %c0_76 = arith.constant 0 : index
    %c0_77 = arith.constant 0 : index
    %67 = vector.load %arg6[%c0_74, %c0_75, %c0_76, %c0_77] : memref<1x1x160x8xf32, #tpu.memory_space<vmem>>, vector<1x1x160x8xf32>
    %68 = vector.shape_cast %67 : vector<1x1x160x8xf32> to vector<160x8xf32>
    %69 = vector.shape_cast %66 : vector<160x8xf32> to vector<1x1x160x8xf32>
    tpu.vector_store %arg6[%c0_74, %c0_75, %c0_76, %c0_77], %69 {strides = array<i32>} : memref<1x1x160x8xf32, #tpu.memory_space<vmem>>, vector<1x1x160x8xf32>,
    return
  }
  func.func @transform_0(%arg0: i32, %arg1: i32) -> (i32, i32, i32, i32) {
    %c0_i32 = arith.constant 0 : i32
    %c0_i32_0 = arith.constant 0 : i32
    %c0_i32_1 = arith.constant 0 : i32
    return %arg0, %arg1, %c0_i32, %c0_i32_0 : i32, i32, i32, i32
  }
  func.func @transform_1(%arg0: i32, %arg1: i32) -> (i32, i32, i32, i32) {
    %c0_i32 = arith.constant 0 : i32
    %c0_i32_0 = arith.constant 0 : i32
    %c0_i32_1 = arith.constant 0 : i32
    %c0_i32_2 = arith.constant 0 : i32
    return %arg0, %c0_i32, %c0_i32_0, %c0_i32_1 : i32, i32, i32, i32
  }
  func.func @transform_2(%arg0: i32, %arg1: i32) -> (i32, i32, i32, i32) {
    %c0_i32 = arith.constant 0 : i32
    %c0_i32_0 = arith.constant 0 : i32
    %c0_i32_1 = arith.constant 0 : i32
    return %arg0, %arg1, %c0_i32, %c0_i32_0 : i32, i32, i32, i32
  }
  func.func @transform_3(%arg0: i32, %arg1: i32) -> (i32, i32) {
    %c0_i32 = arith.constant 0 : i32
    %c0_i32_0 = arith.constant 0 : i32
    %c0_i32_1 = arith.constant 0 : i32
    return %c0_i32, %c0_i32_0 : i32, i32
  }
  func.func @transform_4(%arg0: i32, %arg1: i32) -> (i32, i32, i32, i32) {
    %c0_i32 = arith.constant 0 : i32
    %c0_i32_0 = arith.constant 0 : i32
    %c0_i32_1 = arith.constant 0 : i32
    return %arg0, %arg1, %c0_i32, %c0_i32_0 : i32, i32, i32, i32
  }
}

</mosaic_0001>

<llo_original>
// kernel: tpu_custom_call.1
$region0: #{tpu_custom_call.1}
  #allocation0 [shape = 'u32[]', space=smem, size = 0x4, offset = 0x4, fixed_abs, tag = 'smem constant byte address 0x4 - core index']
  #allocation1 [shape = 'u32[144,128]{1,0:T(1,128)}', space=vmem, size = 0x12000, scoped, tag = 'internal scratch']
  %s0 = inlined_call_operand.vmem [shape: bf16[2,4,240,4], index: 0, kind: input, shape index: {}]
  %s1 = inlined_call_operand.vmem [shape: bf16[2,9,4,8], index: 1, kind: input, shape index: {}]
  %s2 = inlined_call_operand.vmem [shape: f32[2,4,160,1], index: 2, kind: input, shape index: {}]
  %s3 = inlined_call_operand.vmem [shape: f32[1,8], index: 3, kind: input, shape index: {}]
  %s4 = inlined_call_operand.vmem [shape: f32[2,4,160,8], index: 4, kind: output, shape index: {}]
  %s5 = sld [smem:[#allocation0]]
  $region49: #{tpu_custom_call.1} parent=0
    _
  %s7 = ssub.s32 1, %s5
  %s8 = scalar_select 0, %s7, %s5
  loop: start=0, step=1, limit=10
  $region2: #{tpu_custom_call.1} parent=0 // loop_pre_header
    _
  $region3: #{tpu_custom_call.1} parent=0 // loop_header
    %s10 = sphi 0, %s14
    %p11 = scmp.ge.s32.totalorder %s10, 10
    %s17 = sphi 0, %s29
    %s18 = sphi 0, %s25
    %s19 = sphi 0, %s17
    %s20 = sphi 0, %s18
    %s21 = sphi 0, %s19
    %s22 = sphi 0, %s20
    %s34 = sphi 0, %s36
    %s37 = sphi 0, %s34
    %s38 = sphi 0, %s37
    %s54 = sphi 0, %s38
    %s60 = sphi 0, %s62
    %s63 = sphi 0, %s60
    %s64 = sphi 0, %s63
    %s80 = sphi 0, %s64
    %s88 = sphi 0, %s90
    %s91 = sphi 0, %s88
    %s92 = sphi 0, %s91
    %s108 = sphi 0, %s92
    %s112 = sphi 0, %s112
    %s114 = sphi 0, %s112
    %s115 = sphi 0, %s114
    %s129 = sphi 0, %s115
    %s137 = sphi 0, %s139
    %s140 = sphi 0, %s137
    %s141 = sphi 0, %s140
    %s157 = sphi 0, %s141
  $region4: #{tpu_custom_call.1} parent=0 // loop_header_branch
    %13 = sbr.rel (%p11) target = $region8
  $region5: #{tpu_custom_call.1} parent=0 // loop_body
    %s15 = ssub.s32 %s10, 1
    %s16 = ssub.s32 %s10, 2
    %s23 = sadd.s32 1, %s18
    %p24 = scmp.ge.s32.totalorder %s23, 4
    %s25 = scalar_select %p24, 0, %s23
    %s26 = sadd.s32 1, %s17
    %s27 = scalar_select %p24, %s26, %s17
    %p28 = scmp.ge.s32.totalorder %s27, 2
    %s29 = scalar_select %p28, 0, %s27
    %s30 = ssub.s32 %s17, %s29
    %s31 = ssub.s32 %s18, %s25
    %s32 = sor.u32 %s30, %s31
    %p33 = scmp.eq.s32.totalorder %s32, 0
    %s35 = sadd.s32 %s34, 1
    %s36 = scalar_select %p33, %s34, %s35
    %p39 = pneg %p33
    %p40 = scmp.eq.s32.totalorder %s10, 7
    %p41 = por %p39, %p40
    %p42 = scmp.ne.s32.totalorder %s34, %s37
    %p43 = scmp.eq.s32.totalorder %s10, 0
    %p44 = por %p42, %p43
    %p45 = scmp.ne.s32.totalorder %s34, %s37
    %p46 = scmp.eq.s32.totalorder %s15, 7
    %p47 = por %p45, %p46
    %p48 = scmp.ne.s32.totalorder %s37, %s38
    %p49 = scmp.eq.s32.totalorder %s15, 0
    %p50 = por %p48, %p49
    %p51 = scmp.ne.s32.totalorder %s37, %s38
    %p52 = scmp.eq.s32.totalorder %s16, 7
    %p53 = por %p51, %p52
    %p55 = scmp.ne.s32.totalorder %s38, %s54
    %p56 = scmp.eq.s32.totalorder %s16, 0
    %p57 = por %p55, %p56
    %s58 = ssub.s32 %s17, %s29
    %p59 = scmp.eq.s32.totalorder %s58, 0
    %s61 = sadd.s32 %s60, 1
    %s62 = scalar_select %p59, %s60, %s61
    %p65 = pneg %p59
    %p66 = scmp.eq.s32.totalorder %s10, 7
    %p67 = por %p65, %p66
    %p68 = scmp.ne.s32.totalorder %s60, %s63
    %p69 = scmp.eq.s32.totalorder %s10, 0
    %p70 = por %p68, %p69
    %p71 = scmp.ne.s32.totalorder %s60, %s63
    %p72 = scmp.eq.s32.totalorder %s15, 7
    %p73 = por %p71, %p72
    %p74 = scmp.ne.s32.totalorder %s63, %s64
    %p75 = scmp.eq.s32.totalorder %s15, 0
    %p76 = por %p74, %p75
    %p77 = scmp.ne.s32.totalorder %s63, %s64
    %p78 = scmp.eq.s32.totalorder %s16, 7
    %p79 = por %p77, %p78
    %p81 = scmp.ne.s32.totalorder %s64, %s80
    %p82 = scmp.eq.s32.totalorder %s16, 0
    %p83 = por %p81, %p82
    %s84 = ssub.s32 %s17, %s29
    %s85 = ssub.s32 %s18, %s25
    %s86 = sor.u32 %s84, %s85
    %p87 = scmp.eq.s32.totalorder %s86, 0
    %s89 = sadd.s32 %s88, 1
    %s90 = scalar_select %p87, %s88, %s89
    %p93 = pneg %p87
    %p94 = scmp.eq.s32.totalorder %s10, 7
    %p95 = por %p93, %p94
    %p96 = scmp.ne.s32.totalorder %s88, %s91
    %p97 = scmp.eq.s32.totalorder %s10, 0
    %p98 = por %p96, %p97
    %p99 = scmp.ne.s32.totalorder %s88, %s91
    %p100 = scmp.eq.s32.totalorder %s15, 7
    %p101 = por %p99, %p100
    %p102 = scmp.ne.s32.totalorder %s91, %s92
    %p103 = scmp.eq.s32.totalorder %s15, 0
    %p104 = por %p102, %p103
    %p105 = scmp.ne.s32.totalorder %s91, %s92
    %p106 = scmp.eq.s32.totalorder %s16, 7
    %p107 = por %p105, %p106
    %p109 = scmp.ne.s32.totalorder %s92, %s108
    %p110 = scmp.eq.s32.totalorder %s16, 0
    %p111 = por %p109, %p110
    %s113 = sadd.s32 %s112, 1
    %p116 = scmp.eq.s32.totalorder %s10, 7
    %p117 = scmp.ne.s32.totalorder %s112, %s114
    %p118 = scmp.eq.s32.totalorder %s10, 0
    %p119 = por %p117, %p118
    %p120 = scmp.ne.s32.totalorder %s112, %s114
    %p121 = scmp.eq.s32.totalorder %s15, 7
    %p122 = por %p120, %p121
    %p123 = scmp.ne.s32.totalorder %s114, %s115
    %p124 = scmp.eq.s32.totalorder %s15, 0
    %p125 = por %p123, %p124
    %p126 = scmp.ne.s32.totalorder %s114, %s115
    %p127 = scmp.eq.s32.totalorder %s16, 7
    %p128 = por %p126, %p127
    %p130 = scmp.ne.s32.totalorder %s115, %s129
    %p131 = scmp.eq.s32.totalorder %s16, 0
    %p132 = por %p130, %p131
    %s133 = ssub.s32 %s17, %s29
    %s134 = ssub.s32 %s18, %s25
    %s135 = sor.u32 %s133, %s134
    %p136 = scmp.eq.s32.totalorder %s135, 0
    %s138 = sadd.s32 %s137, 1
    %s139 = scalar_select %p136, %s137, %s138
    %p142 = pneg %p136
    %p143 = scmp.eq.s32.totalorder %s10, 7
    %p144 = por %p142, %p143
    %p145 = scmp.ne.s32.totalorder %s137, %s140
    %p146 = scmp.eq.s32.totalorder %s10, 0
    %p147 = por %p145, %p146
    %p148 = scmp.ne.s32.totalorder %s137, %s140
    %p149 = scmp.eq.s32.totalorder %s15, 7
    %p150 = por %p148, %p149
    %p151 = scmp.ne.s32.totalorder %s140, %s141
    %p152 = scmp.eq.s32.totalorder %s15, 0
    %p153 = por %p151, %p152
    %p154 = scmp.ne.s32.totalorder %s140, %s141
    %p155 = scmp.eq.s32.totalorder %s16, 7
    %p156 = por %p154, %p155
    %p158 = scmp.ne.s32.totalorder %s141, %s157
    %p159 = scmp.eq.s32.totalorder %s16, 0
    %p160 = por %p158, %p159
    %p161 = scmp.le.s32.totalorder 1, %s10
    %p162 = scmp.lt.s32.totalorder %s10, 9
    %p163 = pnand %p161, %p162
    %p164 = pneg %p163
    // Predicated region
    $region9: #{tpu_custom_call.1} parent=5 // pred_check
      _
    $region10: #{tpu_custom_call.1} parent=5 // pred_check_branch
      %166 = sbr.rel (%p163) target = $region12
    $region11: #{tpu_custom_call.1} parent=5 // pred_region
      %s167 = ssub.s32 %s10, 1
      // Predicated region
      $region13: #{tpu_custom_call.1} parent=11 // pred_check
        %p168 = pneg %p125
      $region14: #{tpu_custom_call.1} parent=11 // pred_check_branch
        %170 = sbr.rel (%p168) target = $region16
      $region15: #{tpu_custom_call.1} parent=11 // pred_region
        _
      $region16: #{tpu_custom_call.1} parent=11 // pred_fallthru
        _
    $region12: #{tpu_custom_call.1} parent=5 // pred_fallthru
      _
    %p171 = scmp.lt.s32.totalorder %s10, 8
    // Predicated region
    $region17: #{tpu_custom_call.1} parent=5 // pred_check
      %p172 = pneg %p171
    $region18: #{tpu_custom_call.1} parent=5 // pred_check_branch
      %174 = sbr.rel (%p172) target = $region20
    $region19: #{tpu_custom_call.1} parent=5 // pred_region
      // Predicated region
      $region21: #{tpu_custom_call.1} parent=19 // pred_check
        %p175 = pneg %p44
      $region22: #{tpu_custom_call.1} parent=19 // pred_check_branch
        %177 = sbr.rel (%p175) target = $region24
      $region23: #{tpu_custom_call.1} parent=19 // pred_region
        %p178 = scmp.lt.s32.totalorder %s17, 1
        %s179 = scalar_select %p178, %s17, 1
        %p180 = scmp.lt.s32.totalorder %s18, 3
        %s181 = scalar_select %p180, %s18, 3
        %s182 = smul.addr %s181, 30
        %s183 = smul.addr %s179, 120
        %s184 = sadd.s32 %s182, %s183
        %s185 = smul.addr %s184, 4
        %s186 = scalar_lea.vmem %s0, %s185
      $region24: #{tpu_custom_call.1} parent=19 // pred_fallthru
        _
      // Predicated region
      $region25: #{tpu_custom_call.1} parent=19 // pred_check
        %p187 = pneg %p70
      $region26: #{tpu_custom_call.1} parent=19 // pred_check_branch
        %189 = sbr.rel (%p187) target = $region28
      $region27: #{tpu_custom_call.1} parent=19 // pred_region
        %p190 = scmp.lt.s32.totalorder %s17, 1
        %s191 = scalar_select %p190, %s17, 1
        %s192 = smul.addr %s191, 9
        %s193 = smul.addr %s192, 2
        %s194 = scalar_lea.vmem %s1, %s193
      $region28: #{tpu_custom_call.1} parent=19 // pred_fallthru
        _
      // Predicated region
      $region29: #{tpu_custom_call.1} parent=19 // pred_check
        %p195 = pneg %p98
      $region30: #{tpu_custom_call.1} parent=19 // pred_check_branch
        %197 = sbr.rel (%p195) target = $region32
      $region31: #{tpu_custom_call.1} parent=19 // pred_region
        %p198 = scmp.lt.s32.totalorder %s17, 1
        %s199 = scalar_select %p198, %s17, 1
        %p200 = scmp.lt.s32.totalorder %s18, 3
        %s201 = scalar_select %p200, %s18, 3
        %s202 = smul.addr %s201, 20
        %s203 = smul.addr %s199, 80
        %s204 = sadd.s32 %s202, %s203
        %s205 = smul.addr %s204, 8
        %s206 = scalar_lea.vmem %s2, %s205
      $region32: #{tpu_custom_call.1} parent=19 // pred_fallthru
        _
    $region20: #{tpu_custom_call.1} parent=5 // pred_fallthru
      _
    %p207 = scmp.le.s32.totalorder 1, %s10
    %p208 = scmp.lt.s32.totalorder %s10, 9
    %p209 = pnand %p207, %p208
    %p210 = pneg %p209
    // Predicated region
    $region33: #{tpu_custom_call.1} parent=5 // pred_check
      _
    $region34: #{tpu_custom_call.1} parent=5 // pred_check_branch
      %212 = sbr.rel (%p209) target = $region36
    $region35: #{tpu_custom_call.1} parent=5 // pred_region
      %s213 = ssub.s32 %s10, 1
      %p214 = scmp.lt.s32.totalorder %s19, 1
      %s215 = scalar_select %p214, %s19, 1
      %p216 = scmp.lt.s32.totalorder %s20, 3
      %s217 = scalar_select %p216, %s20, 3
      %s218 = smul.addr %s217, 30
      %s219 = smul.addr %s215, 120
      %s220 = sadd.s32 %s218, %s219
      %s221 = smul.addr %s220, 4
      %s222 = scalar_lea.vmem %s0, %s221
      %p223 = pneg %p50
      %p224 = pneg %p47
      %p225 = scmp.lt.s32.totalorder %s19, 1
      %s226 = scalar_select %p225, %s19, 1
      %s227 = smul.addr %s226, 9
      %s228 = smul.addr %s227, 2
      %s229 = scalar_lea.vmem %s1, %s228
      %p230 = pneg %p76
      %p231 = pneg %p73
      %p232 = scmp.lt.s32.totalorder %s19, 1
      %s233 = scalar_select %p232, %s19, 1
      %p234 = scmp.lt.s32.totalorder %s20, 3
      %s235 = scalar_select %p234, %s20, 3
      %s236 = smul.addr %s235, 20
      %s237 = smul.addr %s233, 80
      %s238 = sadd.s32 %s236, %s237
      %s239 = smul.addr %s238, 8
      %s240 = scalar_lea.vmem %s2, %s239
      %p241 = pneg %p104
      %p242 = pneg %p101
      %p243 = pneg %p125
      %p244 = pneg %p122
      %p245 = pneg %p153
      %p246 = pneg %p150
      %p247 = scmp.lt.s32.totalorder %s19, 1
      %s248 = scalar_select %p247, %s19, 1
      %p249 = scmp.lt.s32.totalorder %s20, 3
      %s250 = scalar_select %p249, %s20, 3
      %s251 = smul.addr %s250, 20
      %s252 = smul.addr %s248, 80
      %s253 = sadd.s32 %s251, %s252
      %s254 = smul.addr %s253, 8
      %s255 = scalar_lea.vmem %s4, %s254
      %p256 = scmp.lt.s32.totalorder %s19, 1
      %s257 = scalar_select %p256, %s19, 1
      %p258 = scmp.lt.s32.totalorder %s20, 3
      %s259 = scalar_select %p258, %s20, 3
      %s260 = smul.addr %s259, 30
      %s261 = smul.addr %s257, 120
      %s262 = sadd.s32 %s260, %s261
      %s263 = smul.addr %s262, 4
      %s264 = scalar_lea.vmem %s0, %s263
      %p265 = scmp.lt.s32.totalorder %s19, 1
      %s266 = scalar_select %p265, %s19, 1
      %s267 = smul.addr %s266, 9
      %s268 = smul.addr %s267, 2
      %s269 = scalar_lea.vmem %s1, %s268
      %p270 = scmp.lt.s32.totalorder %s19, 1
      %s271 = scalar_select %p270, %s19, 1
      %p272 = scmp.lt.s32.totalorder %s20, 3
      %s273 = scalar_select %p272, %s20, 3
      %s274 = smul.addr %s273, 20
      %s275 = smul.addr %s271, 80
      %s276 = sadd.s32 %s274, %s275
      %s277 = smul.addr %s276, 8
      %s278 = scalar_lea.vmem %s2, %s277
      %p279 = scmp.lt.s32.totalorder %s19, 1
      %s280 = scalar_select %p279, %s19, 1
      %p281 = scmp.lt.s32.totalorder %s20, 3
      %s282 = scalar_select %p281, %s20, 3
      %s283 = smul.addr %s282, 20
      %s284 = smul.addr %s280, 80
      %s285 = sadd.s32 %s283, %s284
      %s286 = smul.addr %s285, 8
      %s287 = scalar_lea.vmem %s4, %s286
      %v289 = vld [vmem:[%s264] sm:$0xf]
      %v290 = vld [vmem:[%s264 + $0x4] sm:$0xf]
      %v291 = vld [vmem:[%s264 + $0x8] sm:$0xf]
      %v292 = vld [vmem:[%s264 + $0xc] sm:$0xf]
      %v293 = vld [vmem:[%s264 + $0x10] sm:$0xf]
      %v294 = vld [vmem:[%s264 + $0x14] sm:$0xf]
      %v295 = vld [vmem:[%s264 + $0x18] sm:$0xf]
      %v296 = vld [vmem:[%s264 + $0x1c] sm:$0xf]
      %v297 = vld [vmem:[%s264 + $0x20] sm:$0xf]
      %v298 = vld [vmem:[%s264 + $0x24] sm:$0xf]
      %v299 = vld [vmem:[%s264 + $0x28] sm:$0xf]
      %v300 = vld [vmem:[%s264 + $0x2c] sm:$0xf]
      %v301 = vld [vmem:[%s264 + $0x30] sm:$0xf]
      %v302 = vld [vmem:[%s264 + $0x34] sm:$0xf]
      %v303 = vld [vmem:[%s264 + $0x38] sm:$0xf]
      %v304 = vld [vmem:[%s264 + $0x3c] sm:$0xf]
      %v305 = vld [vmem:[%s264 + $0x40] sm:$0xf]
      %v306 = vld [vmem:[%s264 + $0x44] sm:$0xf]
      %v307 = vld [vmem:[%s264 + $0x48] sm:$0xf]
      %v308 = vld [vmem:[%s264 + $0x4c] sm:$0xf]
      %v309 = vld [vmem:[%s269] sm:$0x3]
      %v310 = vld [vmem:[%s264 + $0x50] sm:$0x1]
      %s311 = scalar_lea.vmem %s269, 2
      %v312 = vld [vmem:[%s311] sm:$0x3]
      %v334 = vunpack.c.l.b16 %v289
      %v335 = vunpack.c.l.b16 %v290
      %v336 = vunpack.c.l.b16 %v291
      %v337 = vunpack.c.l.b16 %v292
      %v338 = vunpack.c.l.b16 %v293
      %v339 = vunpack.c.l.b16 %v294
      %v340 = vunpack.c.l.b16 %v295
      %v341 = vunpack.c.l.b16 %v296
      %v342 = vunpack.c.l.b16 %v297
      %v343 = vunpack.c.l.b16 %v298
      %v344 = vunpack.c.l.b16 %v299
      %v345 = vunpack.c.l.b16 %v300
      %v346 = vunpack.c.l.b16 %v301
      %v347 = vunpack.c.l.b16 %v302
      %v348 = vunpack.c.l.b16 %v303
      %v349 = vunpack.c.l.b16 %v304
      %v350 = vunpack.c.l.b16 %v305
      %v351 = vunpack.c.l.b16 %v306
      %v352 = vunpack.c.l.b16 %v307
      %v353 = vunpack.c.l.b16 %v308
      %v354 = vunpack.c.l.b16 %v310
      %v355 = vpack.c.b16 %v335, %v334
      %v356 = vpack.c.b16 %v337, %v336
      %v357 = vpack.c.b16 %v339, %v338
      %v358 = vpack.c.b16 %v341, %v340
      %v359 = vpack.c.b16 %v343, %v342
      %v360 = vpack.c.b16 %v345, %v344
      %v361 = vpack.c.b16 %v347, %v346
      %v362 = vpack.c.b16 %v349, %v348
      %v363 = vpack.c.b16 %v351, %v350
      %v364 = vpack.c.b16 %v353, %v352
      %v365 = vpack.c.b16 %v354, %v354
      %vm366 = vsmask.f32 7424
      %v368 = vshrl.u32 %v355, 16
      %v370 = vshll.u32 %v355, 16
      %v372 = vrot.slane %v370, 1
      %v373 = vor.u32 %v368, %v372
      %v375 = vshll.u32 %v356, 16
      %v377 = vrot.slane %v375, 1
      %v378 = vsel %vm366, %v373, %v377
      %v379 = vshrl.u32 %v356, 16
      %v381 = vor.u32 %v379, %v377
      %v383 = vshll.u32 %v357, 16
      %v385 = vrot.slane %v383, 1
      %v386 = vsel %vm366, %v381, %v385
      %v387 = vshrl.u32 %v357, 16
      %v389 = vor.u32 %v387, %v385
      %v391 = vshll.u32 %v358, 16
      %v393 = vrot.slane %v391, 1
      %v394 = vsel %vm366, %v389, %v393
      %v395 = vshrl.u32 %v358, 16
      %v397 = vor.u32 %v395, %v393
      %v399 = vshll.u32 %v359, 16
      %v401 = vrot.slane %v399, 1
      %v402 = vsel %vm366, %v397, %v401
      %v403 = vshrl.u32 %v359, 16
      %v405 = vor.u32 %v403, %v401
      %v407 = vshll.u32 %v360, 16
      %v409 = vrot.slane %v407, 1
      %v410 = vsel %vm366, %v405, %v409
      %v411 = vshrl.u32 %v360, 16
      %v413 = vor.u32 %v411, %v409
      %v415 = vshll.u32 %v361, 16
      %v417 = vrot.slane %v415, 1
      %v418 = vsel %vm366, %v413, %v417
      %v419 = vshrl.u32 %v361, 16
      %v421 = vor.u32 %v419, %v417
      %v423 = vshll.u32 %v362, 16
      %v425 = vrot.slane %v423, 1
      %v426 = vsel %vm366, %v421, %v425
      %v427 = vshrl.u32 %v362, 16
      %v429 = vor.u32 %v427, %v425
      %v431 = vshll.u32 %v363, 16
      %v433 = vrot.slane %v431, 1
      %v434 = vsel %vm366, %v429, %v433
      %v435 = vshrl.u32 %v363, 16
      %v437 = vor.u32 %v435, %v433
      %v439 = vshll.u32 %v364, 16
      %v441 = vrot.slane %v439, 1
      %v442 = vsel %vm366, %v437, %v441
      %v443 = vshrl.u32 %v364, 16
      %v445 = vor.u32 %v443, %v441
      %v447 = vshll.u32 %v365, 16
      %v449 = vrot.slane %v447, 1
      %v450 = vsel %vm366, %v445, %v449
      %vm451 = vcmask 31744
      %v453 = vsel %vm451, %v378, 0
      %v456 = vsel %vm451, %v386, 0
      %v459 = vsel %vm451, %v394, 0
      %v462 = vsel %vm451, %v402, 0
      %v465 = vsel %vm451, %v410, 0
      %v468 = vsel %vm451, %v418, 0
      %v471 = vsel %vm451, %v426, 0
      %v474 = vsel %vm451, %v434, 0
      %v477 = vsel %vm451, %v442, 0
      %v480 = vsel %vm451, %v450, 0
      %vm482 = vcmask 1041408
      %v484 = vsel %vm482, %v312, 0
      %486 = vmatprep.subr.bf16.mxu0 0
      %487 = vmatpush1.bf16.msra.mxu0 %v484
      %488 = vmatprep.subr.bf16.mxu0 0
      %489 = vmatpush1.bf16.msra.mxu0 0
      %490 = vmatprep.subr.bf16.mxu0 0
      %491 = vmatpush1.bf16.msra.mxu0 0
      %492 = vmatprep.subr.bf16.mxu0 0
      %493 = vmatpush1.bf16.msra.mxu0 0
      %494 = vmatprep.subr.bf16.mxu0 0
      %495 = vmatpush1.bf16.msra.mxu0 0
      %496 = vmatprep.subr.bf16.mxu0 0
      %497 = vmatpush1.bf16.msra.mxu0 0
      %498 = vmatprep.subr.bf16.mxu0 0
      %499 = vmatpush1.bf16.msra.mxu0 0
      %500 = vmatprep.subr.bf16.mxu0 0
      %501 = vmatpush1.bf16.msra.mxu0 0
      %502 = vmatprep.subr.bf16.mxu0 0
      %503 = vmatpush1.bf16.msra.mxu0 0
      %504 = vmatprep.subr.bf16.mxu0 0
      %505 = vmatpush1.bf16.msra.mxu0 0
      %506 = vmatprep.subr.bf16.mxu0 0
      %507 = vmatpush1.bf16.msra.mxu0 0
      %508 = vmatprep.subr.bf16.mxu0 0
      %509 = vmatpush1.bf16.msra.mxu0 0
      %510 = vmatprep.subr.bf16.mxu0 0
      %511 = vmatpush1.bf16.msra.mxu0 0
      %512 = vmatprep.subr.bf16.mxu0 0
      %513 = vmatpush1.bf16.msra.mxu0 0
      %514 = vmatprep.subr.bf16.mxu0 0
      %515 = vmatpush1.bf16.msra.mxu0 0
      %516 = vmatprep.subr.bf16.mxu0 0
      %517 = vmatpush1.bf16.msra.mxu0 0
      %518 = vmatprep.mubr.bf16.mxu0 0
      %519 = vmatmul.mubr.bf16.gmra.mrb[0].mxu0 %v453
      %v520 = vpop.f32.mrb[0].mxu0
      %v521 = vadd.f32 0.0, %v520
      %v522 = vpop.f32.mrb[0].mxu0
      %v523 = vpop.f32.mrb[0].mxu0
      %v524 = vadd.f32 0.0, %v523
      %v525 = vpop.f32.mrb[0].mxu0
      %526 = vmatprep.mubr.bf16.mxu0 0
      %527 = vmatmul.mubr.bf16.gmra.mrb[0].mxu0 %v456
      %v528 = vpop.f32.mrb[0].mxu0
      %v529 = vadd.f32 0.0, %v528
      %v530 = vpop.f32.mrb[0].mxu0
      %v531 = vpop.f32.mrb[0].mxu0
      %v532 = vadd.f32 0.0, %v531
      %v533 = vpop.f32.mrb[0].mxu0
      %534 = vmatprep.mubr.bf16.mxu0 0
      %535 = vmatmul.mubr.bf16.gmra.mrb[0].mxu0 %v459
      %v536 = vpop.f32.mrb[0].mxu0
      %v537 = vadd.f32 0.0, %v536
      %v538 = vpop.f32.mrb[0].mxu0
      %v539 = vpop.f32.mrb[0].mxu0
      %v540 = vadd.f32 0.0, %v539
      %v541 = vpop.f32.mrb[0].mxu0
      %542 = vmatprep.mubr.bf16.mxu0 0
      %543 = vmatmul.mubr.bf16.gmra.mrb[0].mxu0 %v462
      %v544 = vpop.f32.mrb[0].mxu0
      %v545 = vadd.f32 0.0, %v544
      %v546 = vpop.f32.mrb[0].mxu0
      %v547 = vpop.f32.mrb[0].mxu0
      %v548 = vadd.f32 0.0, %v547
      %v549 = vpop.f32.mrb[0].mxu0
      %550 = vmatprep.mubr.bf16.mxu0 0
      %551 = vmatmul.mubr.bf16.gmra.mrb[0].mxu0 %v465
      %v552 = vpop.f32.mrb[0].mxu0
      %v553 = vadd.f32 0.0, %v552
      %v554 = vpop.f32.mrb[0].mxu0
      %v555 = vpop.f32.mrb[0].mxu0
      %v556 = vadd.f32 0.0, %v555
      %v557 = vpop.f32.mrb[0].mxu0
      %558 = vmatprep.mubr.bf16.mxu0 0
      %559 = vmatmul.mubr.bf16.gmra.mrb[0].mxu0 %v468
      %v560 = vpop.f32.mrb[0].mxu0
      %v561 = vadd.f32 0.0, %v560
      %v562 = vpop.f32.mrb[0].mxu0
      %v563 = vpop.f32.mrb[0].mxu0
      %v564 = vadd.f32 0.0, %v563
      %v565 = vpop.f32.mrb[0].mxu0
      %566 = vmatprep.mubr.bf16.mxu0 0
      %567 = vmatmul.mubr.bf16.gmra.mrb[0].mxu0 %v471
      %v568 = vpop.f32.mrb[0].mxu0
      %v569 = vadd.f32 0.0, %v568
      %v570 = vpop.f32.mrb[0].mxu0
      %v571 = vpop.f32.mrb[0].mxu0
      %v572 = vadd.f32 0.0, %v571
      %v573 = vpop.f32.mrb[0].mxu0
      %574 = vmatprep.mubr.bf16.mxu0 0
      %575 = vmatmul.mubr.bf16.gmra.mrb[0].mxu0 %v474
      %v576 = vpop.f32.mrb[0].mxu0
      %v577 = vadd.f32 0.0, %v576
      %v578 = vpop.f32.mrb[0].mxu0
      %v579 = vpop.f32.mrb[0].mxu0
      %v580 = vadd.f32 0.0, %v579
      %v581 = vpop.f32.mrb[0].mxu0
      %582 = vmatprep.mubr.bf16.mxu0 0
      %583 = vmatmul.mubr.bf16.gmra.mrb[0].mxu0 %v477
      %v584 = vpop.f32.mrb[0].mxu0
      %v585 = vadd.f32 0.0, %v584
      %v586 = vpop.f32.mrb[0].mxu0
      %v587 = vpop.f32.mrb[0].mxu0
      %v588 = vadd.f32 0.0, %v587
      %v589 = vpop.f32.mrb[0].mxu0
      %590 = vmatprep.mubr.bf16.mxu0 0
      %591 = vmatmul.mubr.bf16.gmra.mrb[0].mxu0 %v480
      %v592 = vpop.f32.mrb[0].mxu0
      %v593 = vadd.f32 0.0, %v592
      %v594 = vpop.f32.mrb[0].mxu0
      %v595 = vpop.f32.mrb[0].mxu0
      %v596 = vadd.f32 0.0, %v595
      %v597 = vpop.f32.mrb[0].mxu0
      %598 = vdwg.mxu0
      %v599 = vsel %vm451, %v355, 0
      %v601 = vsel %vm451, %v356, 0
      %v603 = vsel %vm451, %v357, 0
      %v605 = vsel %vm451, %v358, 0
      %v607 = vsel %vm451, %v359, 0
      %v609 = vsel %vm451, %v360, 0
      %v611 = vsel %vm451, %v361, 0
      %v613 = vsel %vm451, %v362, 0
      %v615 = vsel %vm451, %v363, 0
      %v617 = vsel %vm451, %v364, 0
      %v620 = vsel %vm482, %v309, 0
      %622 = vmatprep.subr.bf16.mxu0 0
      %623 = vmatpush1.bf16.msra.mxu0 %v620
      %624 = vmatprep.subr.bf16.mxu0 0
      %625 = vmatpush1.bf16.msra.mxu0 0
      %626 = vmatprep.subr.bf16.mxu0 0
      %627 = vmatpush1.bf16.msra.mxu0 0
      %628 = vmatprep.subr.bf16.mxu0 0
      %629 = vmatpush1.bf16.msra.mxu0 0
      %630 = vmatprep.subr.bf16.mxu0 0
      %631 = vmatpush1.bf16.msra.mxu0 0
      %632 = vmatprep.subr.bf16.mxu0 0
      %633 = vmatpush1.bf16.msra.mxu0 0
      %634 = vmatprep.subr.bf16.mxu0 0
      %635 = vmatpush1.bf16.msra.mxu0 0
      %636 = vmatprep.subr.bf16.mxu0 0
      %637 = vmatpush1.bf16.msra.mxu0 0
      %638 = vmatprep.subr.bf16.mxu0 0
      %639 = vmatpush1.bf16.msra.mxu0 0
      %640 = vmatprep.subr.bf16.mxu0 0
      %641 = vmatpush1.bf16.msra.mxu0 0
      %642 = vmatprep.subr.bf16.mxu0 0
      %643 = vmatpush1.bf16.msra.mxu0 0
      %644 = vmatprep.subr.bf16.mxu0 0
      %645 = vmatpush1.bf16.msra.mxu0 0
      %646 = vmatprep.subr.bf16.mxu0 0
      %647 = vmatpush1.bf16.msra.mxu0 0
      %648 = vmatprep.subr.bf16.mxu0 0
      %649 = vmatpush1.bf16.msra.mxu0 0
      %650 = vmatprep.subr.bf16.mxu0 0
      %651 = vmatpush1.bf16.msra.mxu0 0
      %652 = vmatprep.subr.bf16.mxu0 0
      %653 = vmatpush1.bf16.msra.mxu0 0
      %654 = vmatprep.mubr.bf16.mxu0 0
      %655 = vmatmul.mubr.bf16.gmra.mrb[0].mxu0 %v599
      %v656 = vpop.f32.mrb[0].mxu0
      %v657 = vadd.f32 %v521, %v656
      %v658 = vpop.f32.mrb[0].mxu0
      %v659 = vpop.f32.mrb[0].mxu0
      %v660 = vadd.f32 %v524, %v659
      %v661 = vpop.f32.mrb[0].mxu0
      %662 = vmatprep.mubr.bf16.mxu0 0
      %663 = vmatmul.mubr.bf16.gmra.mrb[0].mxu0 %v601
      %v664 = vpop.f32.mrb[0].mxu0
      %v665 = vadd.f32 %v529, %v664
      %v666 = vpop.f32.mrb[0].mxu0
      %v667 = vpop.f32.mrb[0].mxu0
      %v668 = vadd.f32 %v532, %v667
      %v669 = vpop.f32.mrb[0].mxu0
      %670 = vmatprep.mubr.bf16.mxu0 0
      %671 = vmatmul.mubr.bf16.gmra.mrb[0].mxu0 %v603
      %v672 = vpop.f32.mrb[0].mxu0
      %v673 = vadd.f32 %v537, %v672
      %v674 = vpop.f32.mrb[0].mxu0
      %v675 = vpop.f32.mrb[0].mxu0
      %v676 = vadd.f32 %v540, %v675
      %v677 = vpop.f32.mrb[0].mxu0
      %678 = vmatprep.mubr.bf16.mxu0 0
      %679 = vmatmul.mubr.bf16.gmra.mrb[0].mxu0 %v605
      %v680 = vpop.f32.mrb[0].mxu0
      %v681 = vadd.f32 %v545, %v680
      %v682 = vpop.f32.mrb[0].mxu0
      %v683 = vpop.f32.mrb[0].mxu0
      %v684 = vadd.f32 %v548, %v683
      %v685 = vpop.f32.mrb[0].mxu0
      %686 = vmatprep.mubr.bf16.mxu0 0
      %687 = vmatmul.mubr.bf16.gmra.mrb[0].mxu0 %v607
      %v688 = vpop.f32.mrb[0].mxu0
      %v689 = vadd.f32 %v553, %v688
      %v690 = vpop.f32.mrb[0].mxu0
      %v691 = vpop.f32.mrb[0].mxu0
      %v692 = vadd.f32 %v556, %v691
      %v693 = vpop.f32.mrb[0].mxu0
      %694 = vmatprep.mubr.bf16.mxu0 0
      %695 = vmatmul.mubr.bf16.gmra.mrb[0].mxu0 %v609
      %v696 = vpop.f32.mrb[0].mxu0
      %v697 = vadd.f32 %v561, %v696
      %v698 = vpop.f32.mrb[0].mxu0
      %v699 = vpop.f32.mrb[0].mxu0
      %v700 = vadd.f32 %v564, %v699
      %v701 = vpop.f32.mrb[0].mxu0
      %702 = vmatprep.mubr.bf16.mxu0 0
      %703 = vmatmul.mubr.bf16.gmra.mrb[0].mxu0 %v611
      %v704 = vpop.f32.mrb[0].mxu0
      %v705 = vadd.f32 %v569, %v704
      %v706 = vpop.f32.mrb[0].mxu0
      %v707 = vpop.f32.mrb[0].mxu0
      %v708 = vadd.f32 %v572, %v707
      %v709 = vpop.f32.mrb[0].mxu0
      %710 = vmatprep.mubr.bf16.mxu0 0
      %711 = vmatmul.mubr.bf16.gmra.mrb[0].mxu0 %v613
      %v712 = vpop.f32.mrb[0].mxu0
      %v713 = vadd.f32 %v577, %v712
      %v714 = vpop.f32.mrb[0].mxu0
      %v715 = vpop.f32.mrb[0].mxu0
      %v716 = vadd.f32 %v580, %v715
      %v717 = vpop.f32.mrb[0].mxu0
      %718 = vmatprep.mubr.bf16.mxu0 0
      %719 = vmatmul.mubr.bf16.gmra.mrb[0].mxu0 %v615
      %v720 = vpop.f32.mrb[0].mxu0
      %v721 = vadd.f32 %v585, %v720
      %v722 = vpop.f32.mrb[0].mxu0
      %v723 = vpop.f32.mrb[0].mxu0
      %v724 = vadd.f32 %v588, %v723
      %v725 = vpop.f32.mrb[0].mxu0
      %726 = vmatprep.mubr.bf16.mxu0 0
      %727 = vmatmul.mubr.bf16.gmra.mrb[0].mxu0 %v617
      %v728 = vpop.f32.mrb[0].mxu0
      %v729 = vadd.f32 %v593, %v728
      %v730 = vpop.f32.mrb[0].mxu0
      %v731 = vpop.f32.mrb[0].mxu0
      %v732 = vadd.f32 %v596, %v731
      %v733 = vpop.f32.mrb[0].mxu0
      %734 = vdwg.mxu0
      %v735 = vld [vmem:[%s264] sm:$0xe]
      %s736 = scalar_lea.vmem %s269, 4
      %v737 = vld [vmem:[%s736] sm:$0x3]
      %v739 = vunpack.c.l.b16 %v735
      %v740 = vpack.c.b16 %v335, %v739
      %vm741 = vcmask 1046528
      %v742 = vrot.slane %v740, 1
      %v743 = vrot.slane %v356, 1
      %v744 = vsel %vm741, %v742, %v743
      %v745 = vrot.slane %v357, 1
      %v746 = vsel %vm741, %v743, %v745
      %v747 = vrot.slane %v358, 1
      %v748 = vsel %vm741, %v745, %v747
      %v749 = vrot.slane %v359, 1
      %v750 = vsel %vm741, %v747, %v749
      %v751 = vrot.slane %v360, 1
      %v752 = vsel %vm741, %v749, %v751
      %v753 = vrot.slane %v361, 1
      %v754 = vsel %vm741, %v751, %v753
      %v755 = vrot.slane %v362, 1
      %v756 = vsel %vm741, %v753, %v755
      %v757 = vrot.slane %v363, 1
      %v758 = vsel %vm741, %v755, %v757
      %v759 = vrot.slane %v364, 1
      %v760 = vsel %vm741, %v757, %v759
      %v761 = vrot.slane %v365, 1
      %v762 = vsel %vm741, %v759, %v761
      %v764 = vsel %vm451, %v744, 0
      %v767 = vsel %vm451, %v746, 0
      %v770 = vsel %vm451, %v748, 0
      %v773 = vsel %vm451, %v750, 0
      %v776 = vsel %vm451, %v752, 0
      %v779 = vsel %vm451, %v754, 0
      %v782 = vsel %vm451, %v756, 0
      %v785 = vsel %vm451, %v758, 0
      %v788 = vsel %vm451, %v760, 0
      %v791 = vsel %vm451, %v762, 0
      %v794 = vsel %vm482, %v737, 0
      %796 = vmatprep.subr.bf16.mxu0 0
      %797 = vmatpush1.bf16.msra.mxu0 %v794
      %798 = vmatprep.subr.bf16.mxu0 0
      %799 = vmatpush1.bf16.msra.mxu0 0
      %800 = vmatprep.subr.bf16.mxu0 0
      %801 = vmatpush1.bf16.msra.mxu0 0
      %802 = vmatprep.subr.bf16.mxu0 0
      %803 = vmatpush1.bf16.msra.mxu0 0
      %804 = vmatprep.subr.bf16.mxu0 0
      %805 = vmatpush1.bf16.msra.mxu0 0
      %806 = vmatprep.subr.bf16.mxu0 0
      %807 = vmatpush1.bf16.msra.mxu0 0
      %808 = vmatprep.subr.bf16.mxu0 0
      %809 = vmatpush1.bf16.msra.mxu0 0
      %810 = vmatprep.subr.bf16.mxu0 0
      %811 = vmatpush1.bf16.msra.mxu0 0
      %812 = vmatprep.subr.bf16.mxu0 0
      %813 = vmatpush1.bf16.msra.mxu0 0
      %814 = vmatprep.subr.bf16.mxu0 0
      %815 = vmatpush1.bf16.msra.mxu0 0
      %816 = vmatprep.subr.bf16.mxu0 0
      %817 = vmatpush1.bf16.msra.mxu0 0
      %818 = vmatprep.subr.bf16.mxu0 0
      %819 = vmatpush1.bf16.msra.mxu0 0
      %820 = vmatprep.subr.bf16.mxu0 0
      %821 = vmatpush1.bf16.msra.mxu0 0
      %822 = vmatprep.subr.bf16.mxu0 0
      %823 = vmatpush1.bf16.msra.mxu0 0
      %824 = vmatprep.subr.bf16.mxu0 0
      %825 = vmatpush1.bf16.msra.mxu0 0
      %826 = vmatprep.subr.bf16.mxu0 0
      %827 = vmatpush1.bf16.msra.mxu0 0
      %828 = vmatprep.mubr.bf16.mxu0 0
      %829 = vmatmul.mubr.bf16.gmra.mrb[0].mxu0 %v764
      %v830 = vpop.f32.mrb[0].mxu0
      %v831 = vadd.f32 0.0, %v830
      %v832 = vpop.f32.mrb[0].mxu0
      %v833 = vpop.f32.mrb[0].mxu0
      %v834 = vadd.f32 0.0, %v833
      %v835 = vpop.f32.mrb[0].mxu0
      %836 = vmatprep.mubr.bf16.mxu0 0
      %837 = vmatmul.mubr.bf16.gmra.mrb[0].mxu0 %v767
      %v838 = vpop.f32.mrb[0].mxu0
      %v839 = vadd.f32 0.0, %v838
      %v840 = vpop.f32.mrb[0].mxu0
      %v841 = vpop.f32.mrb[0].mxu0
      %v842 = vadd.f32 0.0, %v841
      %v843 = vpop.f32.mrb[0].mxu0
      %844 = vmatprep.mubr.bf16.mxu0 0
      %845 = vmatmul.mubr.bf16.gmra.mrb[0].mxu0 %v770
      %v846 = vpop.f32.mrb[0].mxu0
      %v847 = vadd.f32 0.0, %v846
      %v848 = vpop.f32.mrb[0].mxu0
      %v849 = vpop.f32.mrb[0].mxu0
      %v850 = vadd.f32 0.0, %v849
      %v851 = vpop.f32.mrb[0].mxu0
      %852 = vmatprep.mubr.bf16.mxu0 0
      %853 = vmatmul.mubr.bf16.gmra.mrb[0].mxu0 %v773
      %v854 = vpop.f32.mrb[0].mxu0
      %v855 = vadd.f32 0.0, %v854
      %v856 = vpop.f32.mrb[0].mxu0
      %v857 = vpop.f32.mrb[0].mxu0
      %v858 = vadd.f32 0.0, %v857
      %v859 = vpop.f32.mrb[0].mxu0
      %860 = vmatprep.mubr.bf16.mxu0 0
      %861 = vmatmul.mubr.bf16.gmra.mrb[0].mxu0 %v776
      %v862 = vpop.f32.mrb[0].mxu0
      %v863 = vadd.f32 0.0, %v862
      %v864 = vpop.f32.mrb[0].mxu0
      %v865 = vpop.f32.mrb[0].mxu0
      %v866 = vadd.f32 0.0, %v865
      %v867 = vpop.f32.mrb[0].mxu0
      %868 = vmatprep.mubr.bf16.mxu0 0
      %869 = vmatmul.mubr.bf16.gmra.mrb[0].mxu0 %v779
      %v870 = vpop.f32.mrb[0].mxu0
      %v871 = vadd.f32 0.0, %v870
      %v872 = vpop.f32.mrb[0].mxu0
      %v873 = vpop.f32.mrb[0].mxu0
      %v874 = vadd.f32 0.0, %v873
      %v875 = vpop.f32.mrb[0].mxu0
      %876 = vmatprep.mubr.bf16.mxu0 0
      %877 = vmatmul.mubr.bf16.gmra.mrb[0].mxu0 %v782
      %v878 = vpop.f32.mrb[0].mxu0
      %v879 = vadd.f32 0.0, %v878
      %v880 = vpop.f32.mrb[0].mxu0
      %v881 = vpop.f32.mrb[0].mxu0
      %v882 = vadd.f32 0.0, %v881
      %v883 = vpop.f32.mrb[0].mxu0
      %884 = vmatprep.mubr.bf16.mxu0 0
      %885 = vmatmul.mubr.bf16.gmra.mrb[0].mxu0 %v785
      %v886 = vpop.f32.mrb[0].mxu0
      %v887 = vadd.f32 0.0, %v886
      %v888 = vpop.f32.mrb[0].mxu0
      %v889 = vpop.f32.mrb[0].mxu0
      %v890 = vadd.f32 0.0, %v889
      %v891 = vpop.f32.mrb[0].mxu0
      %892 = vmatprep.mubr.bf16.mxu0 0
      %893 = vmatmul.mubr.bf16.gmra.mrb[0].mxu0 %v788
      %v894 = vpop.f32.mrb[0].mxu0
      %v895 = vadd.f32 0.0, %v894
      %v896 = vpop.f32.mrb[0].mxu0
      %v897 = vpop.f32.mrb[0].mxu0
      %v898 = vadd.f32 0.0, %v897
      %v899 = vpop.f32.mrb[0].mxu0
      %900 = vmatprep.mubr.bf16.mxu0 0
      %901 = vmatmul.mubr.bf16.gmra.mrb[0].mxu0 %v791
      %v902 = vpop.f32.mrb[0].mxu0
      %v903 = vadd.f32 0.0, %v902
      %v904 = vpop.f32.mrb[0].mxu0
      %v905 = vpop.f32.mrb[0].mxu0
      %v906 = vadd.f32 0.0, %v905
      %v907 = vpop.f32.mrb[0].mxu0
      %908 = vdwg.mxu0
      %v909 = vadd.f32 %v657, %v831
      %v910 = vadd.f32 %v660, %v834
      %v911 = vadd.f32 %v665, %v839
      %v912 = vadd.f32 %v668, %v842
      %v913 = vadd.f32 %v673, %v847
      %v914 = vadd.f32 %v676, %v850
      %v915 = vadd.f32 %v681, %v855
      %v916 = vadd.f32 %v684, %v858
      %v917 = vadd.f32 %v689, %v863
      %v918 = vadd.f32 %v692, %v866
      %v919 = vadd.f32 %v697, %v871
      %v920 = vadd.f32 %v700, %v874
      %v921 = vadd.f32 %v705, %v879
      %v922 = vadd.f32 %v708, %v882
      %v923 = vadd.f32 %v713, %v887
      %v924 = vadd.f32 %v716, %v890
      %v925 = vadd.f32 %v721, %v895
      %v926 = vadd.f32 %v724, %v898
      %v927 = vadd.f32 %v729, %v903
      %v928 = vadd.f32 %v732, %v906
      %v929 = vld [vmem:[%s264 + $0x10] sm:$0xf]
      %v930 = vld [vmem:[%s264 + $0x14] sm:$0xf]
      %v931 = vld [vmem:[%s264 + $0x18] sm:$0xf]
      %v932 = vld [vmem:[%s264 + $0x1c] sm:$0xf]
      %v933 = vld [vmem:[%s264 + $0x20] sm:$0xf]
      %v934 = vld [vmem:[%s264 + $0x24] sm:$0xf]
      %v935 = vld [vmem:[%s264 + $0x28] sm:$0xf]
      %v936 = vld [vmem:[%s264 + $0x2c] sm:$0xf]
      %v937 = vld [vmem:[%s264 + $0x30] sm:$0xf]
      %v938 = vld [vmem:[%s264 + $0x34] sm:$0xf]
      %v939 = vld [vmem:[%s264 + $0x38] sm:$0xf]
      %v940 = vld [vmem:[%s264 + $0x3c] sm:$0xf]
      %v941 = vld [vmem:[%s264 + $0x40] sm:$0xf]
      %v942 = vld [vmem:[%s264 + $0x44] sm:$0xf]
      %v943 = vld [vmem:[%s264 + $0x48] sm:$0xf]
      %v944 = vld [vmem:[%s264 + $0x4c] sm:$0xf]
      %v945 = vld [vmem:[%s264 + $0x50] sm:$0xf]
      %v946 = vld [vmem:[%s264 + $0x54] sm:$0xf]
      %v947 = vld [vmem:[%s264 + $0x58] sm:$0xf]
      %v948 = vld [vmem:[%s264 + $0x5c] sm:$0xf]
      %s949 = scalar_lea.vmem %s269, 6
      %v950 = vld [vmem:[%s949] sm:$0x3]
      %v971 = vunpack.c.l.b16 %v929
      %v972 = vunpack.c.l.b16 %v930
      %v973 = vunpack.c.l.b16 %v931
      %v974 = vunpack.c.l.b16 %v932
      %v975 = vunpack.c.l.b16 %v933
      %v976 = vunpack.c.l.b16 %v934
      %v977 = vunpack.c.l.b16 %v935
      %v978 = vunpack.c.l.b16 %v936
      %v979 = vunpack.c.l.b16 %v937
      %v980 = vunpack.c.l.b16 %v938
      %v981 = vunpack.c.l.b16 %v939
      %v982 = vunpack.c.l.b16 %v940
      %v983 = vunpack.c.l.b16 %v941
      %v984 = vunpack.c.l.b16 %v942
      %v985 = vunpack.c.l.b16 %v943
      %v986 = vunpack.c.l.b16 %v944
      %v987 = vunpack.c.l.b16 %v945
      %v988 = vunpack.c.l.b16 %v946
      %v989 = vunpack.c.l.b16 %v947
      %v990 = vunpack.c.l.b16 %v948
      %v991 = vpack.c.b16 %v972, %v971
      %v992 = vpack.c.b16 %v974, %v973
      %v993 = vpack.c.b16 %v976, %v975
      %v994 = vpack.c.b16 %v978, %v977
      %v995 = vpack.c.b16 %v980, %v979
      %v996 = vpack.c.b16 %v982, %v981
      %v997 = vpack.c.b16 %v984, %v983
      %v998 = vpack.c.b16 %v986, %v985
      %v999 = vpack.c.b16 %v988, %v987
      %v1000 = vpack.c.b16 %v990, %v989
      %v1002 = vsel %vm451, %v991, 0
      %v1005 = vsel %vm451, %v992, 0
      %v1008 = vsel %vm451, %v993, 0
      %v1011 = vsel %vm451, %v994, 0
      %v1014 = vsel %vm451, %v995, 0
      %v1017 = vsel %vm451, %v996, 0
      %v1020 = vsel %vm451, %v997, 0
      %v1023 = vsel %vm451, %v998, 0
      %v1026 = vsel %vm451, %v999, 0
      %v1029 = vsel %vm451, %v1000, 0
      %v1032 = vsel %vm482, %v950, 0
      %1034 = vmatprep.subr.bf16.mxu0 0
      %1035 = vmatpush1.bf16.msra.mxu0 %v1032
      %1036 = vmatprep.subr.bf16.mxu0 0
      %1037 = vmatpush1.bf16.msra.mxu0 0
      %1038 = vmatprep.subr.bf16.mxu0 0
      %1039 = vmatpush1.bf16.msra.mxu0 0
      %1040 = vmatprep.subr.bf16.mxu0 0
      %1041 = vmatpush1.bf16.msra.mxu0 0
      %1042 = vmatprep.subr.bf16.mxu0 0
      %1043 = vmatpush1.bf16.msra.mxu0 0
      %1044 = vmatprep.subr.bf16.mxu0 0
      %1045 = vmatpush1.bf16.msra.mxu0 0
      %1046 = vmatprep.subr.bf16.mxu0 0
      %1047 = vmatpush1.bf16.msra.mxu0 0
      %1048 = vmatprep.subr.bf16.mxu0 0
      %1049 = vmatpush1.bf16.msra.mxu0 0
      %1050 = vmatprep.subr.bf16.mxu0 0
      %1051 = vmatpush1.bf16.msra.mxu0 0
      %1052 = vmatprep.subr.bf16.mxu0 0
      %1053 = vmatpush1.bf16.msra.mxu0 0
      %1054 = vmatprep.subr.bf16.mxu0 0
      %1055 = vmatpush1.bf16.msra.mxu0 0
      %1056 = vmatprep.subr.bf16.mxu0 0
      %1057 = vmatpush1.bf16.msra.mxu0 0
      %1058 = vmatprep.subr.bf16.mxu0 0
      %1059 = vmatpush1.bf16.msra.mxu0 0
      %1060 = vmatprep.subr.bf16.mxu0 0
      %1061 = vmatpush1.bf16.msra.mxu0 0
      %1062 = vmatprep.subr.bf16.mxu0 0
      %1063 = vmatpush1.bf16.msra.mxu0 0
      %1064 = vmatprep.subr.bf16.mxu0 0
      %1065 = vmatpush1.bf16.msra.mxu0 0
      %1066 = vmatprep.mubr.bf16.mxu0 0
      %1067 = vmatmul.mubr.bf16.gmra.mrb[0].mxu0 %v1002
      %v1068 = vpop.f32.mrb[0].mxu0
      %v1069 = vadd.f32 0.0, %v1068
      %v1070 = vpop.f32.mrb[0].mxu0
      %v1071 = vpop.f32.mrb[0].mxu0
      %v1072 = vadd.f32 0.0, %v1071
      %v1073 = vpop.f32.mrb[0].mxu0
      %1074 = vmatprep.mubr.bf16.mxu0 0
      %1075 = vmatmul.mubr.bf16.gmra.mrb[0].mxu0 %v1005
      %v1076 = vpop.f32.mrb[0].mxu0
      %v1077 = vadd.f32 0.0, %v1076
      %v1078 = vpop.f32.mrb[0].mxu0
      %v1079 = vpop.f32.mrb[0].mxu0
      %v1080 = vadd.f32 0.0, %v1079
      %v1081 = vpop.f32.mrb[0].mxu0
      %1082 = vmatprep.mubr.bf16.mxu0 0
      %1083 = vmatmul.mubr.bf16.gmra.mrb[0].mxu0 %v1008
      %v1084 = vpop.f32.mrb[0].mxu0
      %v1085 = vadd.f32 0.0, %v1084
      %v1086 = vpop.f32.mrb[0].mxu0
      %v1087 = vpop.f32.mrb[0].mxu0
      %v1088 = vadd.f32 0.0, %v1087
      %v1089 = vpop.f32.mrb[0].mxu0
      %1090 = vmatprep.mubr.bf16.mxu0 0
      %1091 = vmatmul.mubr.bf16.gmra.mrb[0].mxu0 %v1011
      %v1092 = vpop.f32.mrb[0].mxu0
      %v1093 = vadd.f32 0.0, %v1092
      %v1094 = vpop.f32.mrb[0].mxu0
      %v1095 = vpop.f32.mrb[0].mxu0
      %v1096 = vadd.f32 0.0, %v1095
      %v1097 = vpop.f32.mrb[0].mxu0
      %1098 = vmatprep.mubr.bf16.mxu0 0
      %1099 = vmatmul.mubr.bf16.gmra.mrb[0].mxu0 %v1014
      %v1100 = vpop.f32.mrb[0].mxu0
      %v1101 = vadd.f32 0.0, %v1100
      %v1102 = vpop.f32.mrb[0].mxu0
      %v1103 = vpop.f32.mrb[0].mxu0
      %v1104 = vadd.f32 0.0, %v1103
      %v1105 = vpop.f32.mrb[0].mxu0
      %1106 = vmatprep.mubr.bf16.mxu0 0
      %1107 = vmatmul.mubr.bf16.gmra.mrb[0].mxu0 %v1017
      %v1108 = vpop.f32.mrb[0].mxu0
      %v1109 = vadd.f32 0.0, %v1108
      %v1110 = vpop.f32.mrb[0].mxu0
      %v1111 = vpop.f32.mrb[0].mxu0
      %v1112 = vadd.f32 0.0, %v1111
      %v1113 = vpop.f32.mrb[0].mxu0
      %1114 = vmatprep.mubr.bf16.mxu0 0
      %1115 = vmatmul.mubr.bf16.gmra.mrb[0].mxu0 %v1020
      %v1116 = vpop.f32.mrb[0].mxu0
      %v1117 = vadd.f32 0.0, %v1116
      %v1118 = vpop.f32.mrb[0].mxu0
      %v1119 = vpop.f32.mrb[0].mxu0
      %v1120 = vadd.f32 0.0, %v1119
      %v1121 = vpop.f32.mrb[0].mxu0
      %1122 = vmatprep.mubr.bf16.mxu0 0
      %1123 = vmatmul.mubr.bf16.gmra.mrb[0].mxu0 %v1023
      %v1124 = vpop.f32.mrb[0].mxu0
      %v1125 = vadd.f32 0.0, %v1124
      %v1126 = vpop.f32.mrb[0].mxu0
      %v1127 = vpop.f32.mrb[0].mxu0
      %v1128 = vadd.f32 0.0, %v1127
      %v1129 = vpop.f32.mrb[0].mxu0
      %1130 = vmatprep.mubr.bf16.mxu0 0
      %1131 = vmatmul.mubr.bf16.gmra.mrb[0].mxu0 %v1026
      %v1132 = vpop.f32.mrb[0].mxu0
      %v1133 = vadd.f32 0.0, %v1132
      %v1134 = vpop.f32.mrb[0].mxu0
      %v1135 = vpop.f32.mrb[0].mxu0
      %v1136 = vadd.f32 0.0, %v1135
      %v1137 = vpop.f32.mrb[0].mxu0
      %1138 = vmatprep.mubr.bf16.mxu0 0
      %1139 = vmatmul.mubr.bf16.gmra.mrb[0].mxu0 %v1029
      %v1140 = vpop.f32.mrb[0].mxu0
      %v1141 = vadd.f32 0.0, %v1140
      %v1142 = vpop.f32.mrb[0].mxu0
      %v1143 = vpop.f32.mrb[0].mxu0
      %v1144 = vadd.f32 0.0, %v1143
      %v1145 = vpop.f32.mrb[0].mxu0
      %1146 = vdwg.mxu0
      %v1147 = vadd.f32 %v909, %v1069
      %v1148 = vadd.f32 %v910, %v1072
      %v1149 = vadd.f32 %v911, %v1077
      %v1150 = vadd.f32 %v912, %v1080
      %v1151 = vadd.f32 %v913, %v1085
      %v1152 = vadd.f32 %v914, %v1088
      %v1153 = vadd.f32 %v915, %v1093
      %v1154 = vadd.f32 %v916, %v1096
      %v1155 = vadd.f32 %v917, %v1101
      %v1156 = vadd.f32 %v918, %v1104
      %v1157 = vadd.f32 %v919, %v1109
      %v1158 = vadd.f32 %v920, %v1112
      %v1159 = vadd.f32 %v921, %v1117
      %v1160 = vadd.f32 %v922, %v1120
      %v1161 = vadd.f32 %v923, %v1125
      %v1162 = vadd.f32 %v924, %v1128
      %v1163 = vadd.f32 %v925, %v1133
      %v1164 = vadd.f32 %v926, %v1136
      %v1165 = vadd.f32 %v927, %v1141
      %v1166 = vadd.f32 %v928, %v1144
      %v1167 = vld [vmem:[%s264 + $0x10] sm:$0xf]
      %v1168 = vld [vmem:[%s264 + $0x14] sm:$0xf]
      %v1169 = vld [vmem:[%s264 + $0x18] sm:$0xf]
      %v1170 = vld [vmem:[%s264 + $0x1c] sm:$0xf]
      %v1171 = vld [vmem:[%s264 + $0x20] sm:$0xf]
      %v1172 = vld [vmem:[%s264 + $0x24] sm:$0xf]
      %v1173 = vld [vmem:[%s264 + $0x28] sm:$0xf]
      %v1174 = vld [vmem:[%s264 + $0x2c] sm:$0xf]
      %v1175 = vld [vmem:[%s264 + $0x30] sm:$0xf]
      %v1176 = vld [vmem:[%s264 + $0x34] sm:$0xf]
      %v1177 = vld [vmem:[%s264 + $0x38] sm:$0xf]
      %v1178 = vld [vmem:[%s264 + $0x3c] sm:$0xf]
      %v1179 = vld [vmem:[%s264 + $0x40] sm:$0xf]
      %v1180 = vld [vmem:[%s264 + $0x44] sm:$0xf]
      %v1181 = vld [vmem:[%s264 + $0x48] sm:$0xf]
      %v1182 = vld [vmem:[%s264 + $0x4c] sm:$0xf]
      %v1183 = vld [vmem:[%s264 + $0x50] sm:$0xf]
      %v1184 = vld [vmem:[%s264 + $0x54] sm:$0xf]
      %v1185 = vld [vmem:[%s264 + $0x58] sm:$0xf]
      %v1186 = vld [vmem:[%s264 + $0x5c] sm:$0xf]
      %v1187 = vld [vmem:[%s264 + $0x60] sm:$0x1]
      %s1188 = scalar_lea.vmem %s269, 8
      %v1189 = vld [vmem:[%s1188] sm:$0x3]
      %v1211 = vunpack.c.l.b16 %v1167
      %v1212 = vunpack.c.l.b16 %v1168
      %v1213 = vunpack.c.l.b16 %v1169
      %v1214 = vunpack.c.l.b16 %v1170
      %v1215 = vunpack.c.l.b16 %v1171
      %v1216 = vunpack.c.l.b16 %v1172
      %v1217 = vunpack.c.l.b16 %v1173
      %v1218 = vunpack.c.l.b16 %v1174
      %v1219 = vunpack.c.l.b16 %v1175
      %v1220 = vunpack.c.l.b16 %v1176
      %v1221 = vunpack.c.l.b16 %v1177
      %v1222 = vunpack.c.l.b16 %v1178
      %v1223 = vunpack.c.l.b16 %v1179
      %v1224 = vunpack.c.l.b16 %v1180
      %v1225 = vunpack.c.l.b16 %v1181
      %v1226 = vunpack.c.l.b16 %v1182
      %v1227 = vunpack.c.l.b16 %v1183
      %v1228 = vunpack.c.l.b16 %v1184
      %v1229 = vunpack.c.l.b16 %v1185
      %v1230 = vunpack.c.l.b16 %v1186
      %v1231 = vunpack.c.l.b16 %v1187
      %v1232 = vpack.c.b16 %v1212, %v1211
      %v1233 = vpack.c.b16 %v1214, %v1213
      %v1234 = vpack.c.b16 %v1216, %v1215
      %v1235 = vpack.c.b16 %v1218, %v1217
      %v1236 = vpack.c.b16 %v1220, %v1219
      %v1237 = vpack.c.b16 %v1222, %v1221
      %v1238 = vpack.c.b16 %v1224, %v1223
      %v1239 = vpack.c.b16 %v1226, %v1225
      %v1240 = vpack.c.b16 %v1228, %v1227
      %v1241 = vpack.c.b16 %v1230, %v1229
      %v1242 = vpack.c.b16 %v1231, %v1231
      %v1244 = vshrl.u32 %v1232, 16
      %v1246 = vshll.u32 %v1232, 16
      %v1248 = vrot.slane %v1246, 1
      %v1249 = vor.u32 %v1244, %v1248
      %v1251 = vshll.u32 %v1233, 16
      %v1253 = vrot.slane %v1251, 1
      %v1254 = vsel %vm366, %v1249, %v1253
      %v1255 = vshrl.u32 %v1233, 16
      %v1257 = vor.u32 %v1255, %v1253
      %v1259 = vshll.u32 %v1234, 16
      %v1261 = vrot.slane %v1259, 1
      %v1262 = vsel %vm366, %v1257, %v1261
      %v1263 = vshrl.u32 %v1234, 16
      %v1265 = vor.u32 %v1263, %v1261
      %v1267 = vshll.u32 %v1235, 16
      %v1269 = vrot.slane %v1267, 1
      %v1270 = vsel %vm366, %v1265, %v1269
      %v1271 = vshrl.u32 %v1235, 16
      %v1273 = vor.u32 %v1271, %v1269
      %v1275 = vshll.u32 %v1236, 16
      %v1277 = vrot.slane %v1275, 1
      %v1278 = vsel %vm366, %v1273, %v1277
      %v1279 = vshrl.u32 %v1236, 16
      %v1281 = vor.u32 %v1279, %v1277
      %v1283 = vshll.u32 %v1237, 16
      %v1285 = vrot.slane %v1283, 1
      %v1286 = vsel %vm366, %v1281, %v1285
      %v1287 = vshrl.u32 %v1237, 16
      %v1289 = vor.u32 %v1287, %v1285
      %v1291 = vshll.u32 %v1238, 16
      %v1293 = vrot.slane %v1291, 1
      %v1294 = vsel %vm366, %v1289, %v1293
      %v1295 = vshrl.u32 %v1238, 16
      %v1297 = vor.u32 %v1295, %v1293
      %v1299 = vshll.u32 %v1239, 16
      %v1301 = vrot.slane %v1299, 1
      %v1302 = vsel %vm366, %v1297, %v1301
      %v1303 = vshrl.u32 %v1239, 16
      %v1305 = vor.u32 %v1303, %v1301
      %v1307 = vshll.u32 %v1240, 16
      %v1309 = vrot.slane %v1307, 1
      %v1310 = vsel %vm366, %v1305, %v1309
      %v1311 = vshrl.u32 %v1240, 16
      %v1313 = vor.u32 %v1311, %v1309
      %v1315 = vshll.u32 %v1241, 16
      %v1317 = vrot.slane %v1315, 1
      %v1318 = vsel %vm366, %v1313, %v1317
      %v1319 = vshrl.u32 %v1241, 16
      %v1321 = vor.u32 %v1319, %v1317
      %v1323 = vshll.u32 %v1242, 16
      %v1325 = vrot.slane %v1323, 1
      %v1326 = vsel %vm366, %v1321, %v1325
      %v1328 = vsel %vm451, %v1254, 0
      %v1331 = vsel %vm451, %v1262, 0
      %v1334 = vsel %vm451, %v1270, 0
      %v1337 = vsel %vm451, %v1278, 0
      %v1340 = vsel %vm451, %v1286, 0
      %v1343 = vsel %vm451, %v1294, 0
      %v1346 = vsel %vm451, %v1302, 0
      %v1349 = vsel %vm451, %v1310, 0
      %v1352 = vsel %vm451, %v1318, 0
      %v1355 = vsel %vm451, %v1326, 0
      %v1358 = vsel %vm482, %v1189, 0
      %1360 = vmatprep.subr.bf16.mxu0 0
      %1361 = vmatpush1.bf16.msra.mxu0 %v1358
      %1362 = vmatprep.subr.bf16.mxu0 0
      %1363 = vmatpush1.bf16.msra.mxu0 0
      %1364 = vmatprep.subr.bf16.mxu0 0
      %1365 = vmatpush1.bf16.msra.mxu0 0
      %1366 = vmatprep.subr.bf16.mxu0 0
      %1367 = vmatpush1.bf16.msra.mxu0 0
      %1368 = vmatprep.subr.bf16.mxu0 0
      %1369 = vmatpush1.bf16.msra.mxu0 0
      %1370 = vmatprep.subr.bf16.mxu0 0
      %1371 = vmatpush1.bf16.msra.mxu0 0
      %1372 = vmatprep.subr.bf16.mxu0 0
      %1373 = vmatpush1.bf16.msra.mxu0 0
      %1374 = vmatprep.subr.bf16.mxu0 0
      %1375 = vmatpush1.bf16.msra.mxu0 0
      %1376 = vmatprep.subr.bf16.mxu0 0
      %1377 = vmatpush1.bf16.msra.mxu0 0
      %1378 = vmatprep.subr.bf16.mxu0 0
      %1379 = vmatpush1.bf16.msra.mxu0 0
      %1380 = vmatprep.subr.bf16.mxu0 0
      %1381 = vmatpush1.bf16.msra.mxu0 0
      %1382 = vmatprep.subr.bf16.mxu0 0
      %1383 = vmatpush1.bf16.msra.mxu0 0
      %1384 = vmatprep.subr.bf16.mxu0 0
      %1385 = vmatpush1.bf16.msra.mxu0 0
      %1386 = vmatprep.subr.bf16.mxu0 0
      %1387 = vmatpush1.bf16.msra.mxu0 0
      %1388 = vmatprep.subr.bf16.mxu0 0
      %1389 = vmatpush1.bf16.msra.mxu0 0
      %1390 = vmatprep.subr.bf16.mxu0 0
      %1391 = vmatpush1.bf16.msra.mxu0 0
      %1392 = vmatprep.mubr.bf16.mxu0 0
      %1393 = vmatmul.mubr.bf16.gmra.mrb[0].mxu0 %v1328
      %v1394 = vpop.f32.mrb[0].mxu0
      %v1395 = vadd.f32 0.0, %v1394
      %v1396 = vpop.f32.mrb[0].mxu0
      %v1397 = vpop.f32.mrb[0].mxu0
      %v1398 = vadd.f32 0.0, %v1397
      %v1399 = vpop.f32.mrb[0].mxu0
      %1400 = vmatprep.mubr.bf16.mxu0 0
      %1401 = vmatmul.mubr.bf16.gmra.mrb[0].mxu0 %v1331
      %v1402 = vpop.f32.mrb[0].mxu0
      %v1403 = vadd.f32 0.0, %v1402
      %v1404 = vpop.f32.mrb[0].mxu0
      %v1405 = vpop.f32.mrb[0].mxu0
      %v1406 = vadd.f32 0.0, %v1405
      %v1407 = vpop.f32.mrb[0].mxu0
      %1408 = vmatprep.mubr.bf16.mxu0 0
      %1409 = vmatmul.mubr.bf16.gmra.mrb[0].mxu0 %v1334
      %v1410 = vpop.f32.mrb[0].mxu0
      %v1411 = vadd.f32 0.0, %v1410
      %v1412 = vpop.f32.mrb[0].mxu0
      %v1413 = vpop.f32.mrb[0].mxu0
      %v1414 = vadd.f32 0.0, %v1413
      %v1415 = vpop.f32.mrb[0].mxu0
      %1416 = vmatprep.mubr.bf16.mxu0 0
      %1417 = vmatmul.mubr.bf16.gmra.mrb[0].mxu0 %v1337
      %v1418 = vpop.f32.mrb[0].mxu0
      %v1419 = vadd.f32 0.0, %v1418
      %v1420 = vpop.f32.mrb[0].mxu0
      %v1421 = vpop.f32.mrb[0].mxu0
      %v1422 = vadd.f32 0.0, %v1421
      %v1423 = vpop.f32.mrb[0].mxu0
      %1424 = vmatprep.mubr.bf16.mxu0 0
      %1425 = vmatmul.mubr.bf16.gmra.mrb[0].mxu0 %v1340
      %v1426 = vpop.f32.mrb[0].mxu0
      %v1427 = vadd.f32 0.0, %v1426
      %v1428 = vpop.f32.mrb[0].mxu0
      %v1429 = vpop.f32.mrb[0].mxu0
      %v1430 = vadd.f32 0.0, %v1429
      %v1431 = vpop.f32.mrb[0].mxu0
      %1432 = vmatprep.mubr.bf16.mxu0 0
      %1433 = vmatmul.mubr.bf16.gmra.mrb[0].mxu0 %v1343
      %v1434 = vpop.f32.mrb[0].mxu0
      %v1435 = vadd.f32 0.0, %v1434
      %v1436 = vpop.f32.mrb[0].mxu0
      %v1437 = vpop.f32.mrb[0].mxu0
      %v1438 = vadd.f32 0.0, %v1437
      %v1439 = vpop.f32.mrb[0].mxu0
      %1440 = vmatprep.mubr.bf16.mxu0 0
      %1441 = vmatmul.mubr.bf16.gmra.mrb[0].mxu0 %v1346
      %v1442 = vpop.f32.mrb[0].mxu0
      %v1443 = vadd.f32 0.0, %v1442
      %v1444 = vpop.f32.mrb[0].mxu0
      %v1445 = vpop.f32.mrb[0].mxu0
      %v1446 = vadd.f32 0.0, %v1445
      %v1447 = vpop.f32.mrb[0].mxu0
      %1448 = vmatprep.mubr.bf16.mxu0 0
      %1449 = vmatmul.mubr.bf16.gmra.mrb[0].mxu0 %v1349
      %v1450 = vpop.f32.mrb[0].mxu0
      %v1451 = vadd.f32 0.0, %v1450
      %v1452 = vpop.f32.mrb[0].mxu0
      %v1453 = vpop.f32.mrb[0].mxu0
      %v1454 = vadd.f32 0.0, %v1453
      %v1455 = vpop.f32.mrb[0].mxu0
      %1456 = vmatprep.mubr.bf16.mxu0 0
      %1457 = vmatmul.mubr.bf16.gmra.mrb[0].mxu0 %v1352
      %v1458 = vpop.f32.mrb[0].mxu0
      %v1459 = vadd.f32 0.0, %v1458
      %v1460 = vpop.f32.mrb[0].mxu0
      %v1461 = vpop.f32.mrb[0].mxu0
      %v1462 = vadd.f32 0.0, %v1461
      %v1463 = vpop.f32.mrb[0].mxu0
      %1464 = vmatprep.mubr.bf16.mxu0 0
      %1465 = vmatmul.mubr.bf16.gmra.mrb[0].mxu0 %v1355
      %v1466 = vpop.f32.mrb[0].mxu0
      %v1467 = vadd.f32 0.0, %v1466
      %v1468 = vpop.f32.mrb[0].mxu0
      %v1469 = vpop.f32.mrb[0].mxu0
      %v1470 = vadd.f32 0.0, %v1469
      %v1471 = vpop.f32.mrb[0].mxu0
      %1472 = vdwg.mxu0
      %v1473 = vadd.f32 %v1147, %v1395
      %v1474 = vadd.f32 %v1148, %v1398
      %v1475 = vadd.f32 %v1149, %v1403
      %v1476 = vadd.f32 %v1150, %v1406
      %v1477 = vadd.f32 %v1151, %v1411
      %v1478 = vadd.f32 %v1152, %v1414
      %v1479 = vadd.f32 %v1153, %v1419
      %v1480 = vadd.f32 %v1154, %v1422
      %v1481 = vadd.f32 %v1155, %v1427
      %v1482 = vadd.f32 %v1156, %v1430
      %v1483 = vadd.f32 %v1157, %v1435
      %v1484 = vadd.f32 %v1158, %v1438
      %v1485 = vadd.f32 %v1159, %v1443
      %v1486 = vadd.f32 %v1160, %v1446
      %v1487 = vadd.f32 %v1161, %v1451
      %v1488 = vadd.f32 %v1162, %v1454
      %v1489 = vadd.f32 %v1163, %v1459
      %v1490 = vadd.f32 %v1164, %v1462
      %v1491 = vadd.f32 %v1165, %v1467
      %v1492 = vadd.f32 %v1166, %v1470
      %v1493 = vld [vmem:[%s264 + $0x10] sm:$0xe]
      %s1494 = scalar_lea.vmem %s269, 10
      %v1495 = vld [vmem:[%s1494] sm:$0x3]
      %v1497 = vunpack.c.l.b16 %v1493
      %v1498 = vpack.c.b16 %v1212, %v1497
      %v1499 = vrot.slane %v1498, 1
      %v1500 = vrot.slane %v1233, 1
      %v1501 = vsel %vm741, %v1499, %v1500
      %v1502 = vrot.slane %v1234, 1
      %v1503 = vsel %vm741, %v1500, %v1502
      %v1504 = vrot.slane %v1235, 1
      %v1505 = vsel %vm741, %v1502, %v1504
      %v1506 = vrot.slane %v1236, 1
      %v1507 = vsel %vm741, %v1504, %v1506
      %v1508 = vrot.slane %v1237, 1
      %v1509 = vsel %vm741, %v1506, %v1508
      %v1510 = vrot.slane %v1238, 1
      %v1511 = vsel %vm741, %v1508, %v1510
      %v1512 = vrot.slane %v1239, 1
      %v1513 = vsel %vm741, %v1510, %v1512
      %v1514 = vrot.slane %v1240, 1
      %v1515 = vsel %vm741, %v1512, %v1514
      %v1516 = vrot.slane %v1241, 1
      %v1517 = vsel %vm741, %v1514, %v1516
      %v1518 = vrot.slane %v1242, 1
      %v1519 = vsel %vm741, %v1516, %v1518
      %v1521 = vsel %vm451, %v1501, 0
      %v1524 = vsel %vm451, %v1503, 0
      %v1527 = vsel %vm451, %v1505, 0
      %v1530 = vsel %vm451, %v1507, 0
      %v1533 = vsel %vm451, %v1509, 0
      %v1536 = vsel %vm451, %v1511, 0
      %v1539 = vsel %vm451, %v1513, 0
      %v1542 = vsel %vm451, %v1515, 0
      %v1545 = vsel %vm451, %v1517, 0
      %v1548 = vsel %vm451, %v1519, 0
      %v1551 = vsel %vm482, %v1495, 0
      %1553 = vmatprep.subr.bf16.mxu0 0
      %1554 = vmatpush1.bf16.msra.mxu0 %v1551
      %1555 = vmatprep.subr.bf16.mxu0 0
      %1556 = vmatpush1.bf16.msra.mxu0 0
      %1557 = vmatprep.subr.bf16.mxu0 0
      %1558 = vmatpush1.bf16.msra.mxu0 0
      %1559 = vmatprep.subr.bf16.mxu0 0
      %1560 = vmatpush1.bf16.msra.mxu0 0
      %1561 = vmatprep.subr.bf16.mxu0 0
      %1562 = vmatpush1.bf16.msra.mxu0 0
      %1563 = vmatprep.subr.bf16.mxu0 0
      %1564 = vmatpush1.bf16.msra.mxu0 0
      %1565 = vmatprep.subr.bf16.mxu0 0
      %1566 = vmatpush1.bf16.msra.mxu0 0
      %1567 = vmatprep.subr.bf16.mxu0 0
      %1568 = vmatpush1.bf16.msra.mxu0 0
      %1569 = vmatprep.subr.bf16.mxu0 0
      %1570 = vmatpush1.bf16.msra.mxu0 0
      %1571 = vmatprep.subr.bf16.mxu0 0
      %1572 = vmatpush1.bf16.msra.mxu0 0
      %1573 = vmatprep.subr.bf16.mxu0 0
      %1574 = vmatpush1.bf16.msra.mxu0 0
      %1575 = vmatprep.subr.bf16.mxu0 0
      %1576 = vmatpush1.bf16.msra.mxu0 0
      %1577 = vmatprep.subr.bf16.mxu0 0
      %1578 = vmatpush1.bf16.msra.mxu0 0
      %1579 = vmatprep.subr.bf16.mxu0 0
      %1580 = vmatpush1.bf16.msra.mxu0 0
      %1581 = vmatprep.subr.bf16.mxu0 0
      %1582 = vmatpush1.bf16.msra.mxu0 0
      %1583 = vmatprep.subr.bf16.mxu0 0
      %1584 = vmatpush1.bf16.msra.mxu0 0
      %1585 = vmatprep.mubr.bf16.mxu0 0
      %1586 = vmatmul.mubr.bf16.gmra.mrb[0].mxu0 %v1521
      %v1587 = vpop.f32.mrb[0].mxu0
      %v1588 = vadd.f32 0.0, %v1587
      %v1589 = vpop.f32.mrb[0].mxu0
      %v1590 = vpop.f32.mrb[0].mxu0
      %v1591 = vadd.f32 0.0, %v1590
      %v1592 = vpop.f32.mrb[0].mxu0
      %1593 = vmatprep.mubr.bf16.mxu0 0
      %1594 = vmatmul.mubr.bf16.gmra.mrb[0].mxu0 %v1524
      %v1595 = vpop.f32.mrb[0].mxu0
      %v1596 = vadd.f32 0.0, %v1595
      %v1597 = vpop.f32.mrb[0].mxu0
      %v1598 = vpop.f32.mrb[0].mxu0
      %v1599 = vadd.f32 0.0, %v1598
      %v1600 = vpop.f32.mrb[0].mxu0
      %1601 = vmatprep.mubr.bf16.mxu0 0
      %1602 = vmatmul.mubr.bf16.gmra.mrb[0].mxu0 %v1527
      %v1603 = vpop.f32.mrb[0].mxu0
      %v1604 = vadd.f32 0.0, %v1603
      %v1605 = vpop.f32.mrb[0].mxu0
      %v1606 = vpop.f32.mrb[0].mxu0
      %v1607 = vadd.f32 0.0, %v1606
      %v1608 = vpop.f32.mrb[0].mxu0
      %1609 = vmatprep.mubr.bf16.mxu0 0
      %1610 = vmatmul.mubr.bf16.gmra.mrb[0].mxu0 %v1530
      %v1611 = vpop.f32.mrb[0].mxu0
      %v1612 = vadd.f32 0.0, %v1611
      %v1613 = vpop.f32.mrb[0].mxu0
      %v1614 = vpop.f32.mrb[0].mxu0
      %v1615 = vadd.f32 0.0, %v1614
      %v1616 = vpop.f32.mrb[0].mxu0
      %1617 = vmatprep.mubr.bf16.mxu0 0
      %1618 = vmatmul.mubr.bf16.gmra.mrb[0].mxu0 %v1533
      %v1619 = vpop.f32.mrb[0].mxu0
      %v1620 = vadd.f32 0.0, %v1619
      %v1621 = vpop.f32.mrb[0].mxu0
      %v1622 = vpop.f32.mrb[0].mxu0
      %v1623 = vadd.f32 0.0, %v1622
      %v1624 = vpop.f32.mrb[0].mxu0
      %1625 = vmatprep.mubr.bf16.mxu0 0
      %1626 = vmatmul.mubr.bf16.gmra.mrb[0].mxu0 %v1536
      %v1627 = vpop.f32.mrb[0].mxu0
      %v1628 = vadd.f32 0.0, %v1627
      %v1629 = vpop.f32.mrb[0].mxu0
      %v1630 = vpop.f32.mrb[0].mxu0
      %v1631 = vadd.f32 0.0, %v1630
      %v1632 = vpop.f32.mrb[0].mxu0
      %1633 = vmatprep.mubr.bf16.mxu0 0
      %1634 = vmatmul.mubr.bf16.gmra.mrb[0].mxu0 %v1539
      %v1635 = vpop.f32.mrb[0].mxu0
      %v1636 = vadd.f32 0.0, %v1635
      %v1637 = vpop.f32.mrb[0].mxu0
      %v1638 = vpop.f32.mrb[0].mxu0
      %v1639 = vadd.f32 0.0, %v1638
      %v1640 = vpop.f32.mrb[0].mxu0
      %1641 = vmatprep.mubr.bf16.mxu0 0
      %1642 = vmatmul.mubr.bf16.gmra.mrb[0].mxu0 %v1542
      %v1643 = vpop.f32.mrb[0].mxu0
      %v1644 = vadd.f32 0.0, %v1643
      %v1645 = vpop.f32.mrb[0].mxu0
      %v1646 = vpop.f32.mrb[0].mxu0
      %v1647 = vadd.f32 0.0, %v1646
      %v1648 = vpop.f32.mrb[0].mxu0
      %1649 = vmatprep.mubr.bf16.mxu0 0
      %1650 = vmatmul.mubr.bf16.gmra.mrb[0].mxu0 %v1545
      %v1651 = vpop.f32.mrb[0].mxu0
      %v1652 = vadd.f32 0.0, %v1651
      %v1653 = vpop.f32.mrb[0].mxu0
      %v1654 = vpop.f32.mrb[0].mxu0
      %v1655 = vadd.f32 0.0, %v1654
      %v1656 = vpop.f32.mrb[0].mxu0
      %1657 = vmatprep.mubr.bf16.mxu0 0
      %1658 = vmatmul.mubr.bf16.gmra.mrb[0].mxu0 %v1548
      %v1659 = vpop.f32.mrb[0].mxu0
      %v1660 = vadd.f32 0.0, %v1659
      %v1661 = vpop.f32.mrb[0].mxu0
      %v1662 = vpop.f32.mrb[0].mxu0
      %v1663 = vadd.f32 0.0, %v1662
      %v1664 = vpop.f32.mrb[0].mxu0
      %1665 = vdwg.mxu0
      %v1666 = vadd.f32 %v1473, %v1588
      %v1667 = vadd.f32 %v1474, %v1591
      %v1668 = vadd.f32 %v1475, %v1596
      %v1669 = vadd.f32 %v1476, %v1599
      %v1670 = vadd.f32 %v1477, %v1604
      %v1671 = vadd.f32 %v1478, %v1607
      %v1672 = vadd.f32 %v1479, %v1612
      %v1673 = vadd.f32 %v1480, %v1615
      %v1674 = vadd.f32 %v1481, %v1620
      %v1675 = vadd.f32 %v1482, %v1623
      %v1676 = vadd.f32 %v1483, %v1628
      %v1677 = vadd.f32 %v1484, %v1631
      %v1678 = vadd.f32 %v1485, %v1636
      %v1679 = vadd.f32 %v1486, %v1639
      %v1680 = vadd.f32 %v1487, %v1644
      %v1681 = vadd.f32 %v1488, %v1647
      %v1682 = vadd.f32 %v1489, %v1652
      %v1683 = vadd.f32 %v1490, %v1655
      %v1684 = vadd.f32 %v1491, %v1660
      %v1685 = vadd.f32 %v1492, %v1663
      %v1686 = vld [vmem:[%s264 + $0x20] sm:$0xf]
      %v1687 = vld [vmem:[%s264 + $0x24] sm:$0xf]
      %v1688 = vld [vmem:[%s264 + $0x28] sm:$0xf]
      %v1689 = vld [vmem:[%s264 + $0x2c] sm:$0xf]
      %v1690 = vld [vmem:[%s264 + $0x30] sm:$0xf]
      %v1691 = vld [vmem:[%s264 + $0x34] sm:$0xf]
      %v1692 = vld [vmem:[%s264 + $0x38] sm:$0xf]
      %v1693 = vld [vmem:[%s264 + $0x3c] sm:$0xf]
      %v1694 = vld [vmem:[%s264 + $0x40] sm:$0xf]
      %v1695 = vld [vmem:[%s264 + $0x44] sm:$0xf]
      %v1696 = vld [vmem:[%s264 + $0x48] sm:$0xf]
      %v1697 = vld [vmem:[%s264 + $0x4c] sm:$0xf]
      %v1698 = vld [vmem:[%s264 + $0x50] sm:$0xf]
      %v1699 = vld [vmem:[%s264 + $0x54] sm:$0xf]
      %v1700 = vld [vmem:[%s264 + $0x58] sm:$0xf]
      %v1701 = vld [vmem:[%s264 + $0x5c] sm:$0xf]
      %v1702 = vld [vmem:[%s264 + $0x60] sm:$0xf]
      %v1703 = vld [vmem:[%s264 + $0x64] sm:$0xf]
      %v1704 = vld [vmem:[%s264 + $0x68] sm:$0xf]
      %v1705 = vld [vmem:[%s264 + $0x6c] sm:$0xf]
      %s1706 = scalar_lea.vmem %s269, 12
      %v1707 = vld [vmem:[%s1706] sm:$0x3]
      %v1728 = vunpack.c.l.b16 %v1686
      %v1729 = vunpack.c.l.b16 %v1687
      %v1730 = vunpack.c.l.b16 %v1688
      %v1731 = vunpack.c.l.b16 %v1689
      %v1732 = vunpack.c.l.b16 %v1690
      %v1733 = vunpack.c.l.b16 %v1691
      %v1734 = vunpack.c.l.b16 %v1692
      %v1735 = vunpack.c.l.b16 %v1693
      %v1736 = vunpack.c.l.b16 %v1694
      %v1737 = vunpack.c.l.b16 %v1695
      %v1738 = vunpack.c.l.b16 %v1696
      %v1739 = vunpack.c.l.b16 %v1697
      %v1740 = vunpack.c.l.b16 %v1698
      %v1741 = vunpack.c.l.b16 %v1699
      %v1742 = vunpack.c.l.b16 %v1700
      %v1743 = vunpack.c.l.b16 %v1701
      %v1744 = vunpack.c.l.b16 %v1702
      %v1745 = vunpack.c.l.b16 %v1703
      %v1746 = vunpack.c.l.b16 %v1704
      %v1747 = vunpack.c.l.b16 %v1705
      %v1748 = vpack.c.b16 %v1729, %v1728
      %v1749 = vpack.c.b16 %v1731, %v1730
      %v1750 = vpack.c.b16 %v1733, %v1732
      %v1751 = vpack.c.b16 %v1735, %v1734
      %v1752 = vpack.c.b16 %v1737, %v1736
      %v1753 = vpack.c.b16 %v1739, %v1738
      %v1754 = vpack.c.b16 %v1741, %v1740
      %v1755 = vpack.c.b16 %v1743, %v1742
      %v1756 = vpack.c.b16 %v1745, %v1744
      %v1757 = vpack.c.b16 %v1747, %v1746
      %v1759 = vsel %vm451, %v1748, 0
      %v1762 = vsel %vm451, %v1749, 0
      %v1765 = vsel %vm451, %v1750, 0
      %v1768 = vsel %vm451, %v1751, 0
      %v1771 = vsel %vm451, %v1752, 0
      %v1774 = vsel %vm451, %v1753, 0
      %v1777 = vsel %vm451, %v1754, 0
      %v1780 = vsel %vm451, %v1755, 0
      %v1783 = vsel %vm451, %v1756, 0
      %v1786 = vsel %vm451, %v1757, 0
      %v1789 = vsel %vm482, %v1707, 0
      %1791 = vmatprep.subr.bf16.mxu0 0
      %1792 = vmatpush1.bf16.msra.mxu0 %v1789
      %1793 = vmatprep.subr.bf16.mxu0 0
      %1794 = vmatpush1.bf16.msra.mxu0 0
      %1795 = vmatprep.subr.bf16.mxu0 0
      %1796 = vmatpush1.bf16.msra.mxu0 0
      %1797 = vmatprep.subr.bf16.mxu0 0
      %1798 = vmatpush1.bf16.msra.mxu0 0
      %1799 = vmatprep.subr.bf16.mxu0 0
      %1800 = vmatpush1.bf16.msra.mxu0 0
      %1801 = vmatprep.subr.bf16.mxu0 0
      %1802 = vmatpush1.bf16.msra.mxu0 0
      %1803 = vmatprep.subr.bf16.mxu0 0
      %1804 = vmatpush1.bf16.msra.mxu0 0
      %1805 = vmatprep.subr.bf16.mxu0 0
      %1806 = vmatpush1.bf16.msra.mxu0 0
      %1807 = vmatprep.subr.bf16.mxu0 0
      %1808 = vmatpush1.bf16.msra.mxu0 0
      %1809 = vmatprep.subr.bf16.mxu0 0
      %1810 = vmatpush1.bf16.msra.mxu0 0
      %1811 = vmatprep.subr.bf16.mxu0 0
      %1812 = vmatpush1.bf16.msra.mxu0 0
      %1813 = vmatprep.subr.bf16.mxu0 0
      %1814 = vmatpush1.bf16.msra.mxu0 0
      %1815 = vmatprep.subr.bf16.mxu0 0
      %1816 = vmatpush1.bf16.msra.mxu0 0
      %1817 = vmatprep.subr.bf16.mxu0 0
      %1818 = vmatpush1.bf16.msra.mxu0 0
      %1819 = vmatprep.subr.bf16.mxu0 0
      %1820 = vmatpush1.bf16.msra.mxu0 0
      %1821 = vmatprep.subr.bf16.mxu0 0
      %1822 = vmatpush1.bf16.msra.mxu0 0
      %1823 = vmatprep.mubr.bf16.mxu0 0
      %1824 = vmatmul.mubr.bf16.gmra.mrb[0].mxu0 %v1759
      %v1825 = vpop.f32.mrb[0].mxu0
      %v1826 = vadd.f32 0.0, %v1825
      %v1827 = vpop.f32.mrb[0].mxu0
      %v1828 = vpop.f32.mrb[0].mxu0
      %v1829 = vadd.f32 0.0, %v1828
      %v1830 = vpop.f32.mrb[0].mxu0
      %1831 = vmatprep.mubr.bf16.mxu0 0
      %1832 = vmatmul.mubr.bf16.gmra.mrb[0].mxu0 %v1762
      %v1833 = vpop.f32.mrb[0].mxu0
      %v1834 = vadd.f32 0.0, %v1833
      %v1835 = vpop.f32.mrb[0].mxu0
      %v1836 = vpop.f32.mrb[0].mxu0
      %v1837 = vadd.f32 0.0, %v1836
      %v1838 = vpop.f32.mrb[0].mxu0
      %1839 = vmatprep.mubr.bf16.mxu0 0
      %1840 = vmatmul.mubr.bf16.gmra.mrb[0].mxu0 %v1765
      %v1841 = vpop.f32.mrb[0].mxu0
      %v1842 = vadd.f32 0.0, %v1841
      %v1843 = vpop.f32.mrb[0].mxu0
      %v1844 = vpop.f32.mrb[0].mxu0
      %v1845 = vadd.f32 0.0, %v1844
      %v1846 = vpop.f32.mrb[0].mxu0
      %1847 = vmatprep.mubr.bf16.mxu0 0
      %1848 = vmatmul.mubr.bf16.gmra.mrb[0].mxu0 %v1768
      %v1849 = vpop.f32.mrb[0].mxu0
      %v1850 = vadd.f32 0.0, %v1849
      %v1851 = vpop.f32.mrb[0].mxu0
      %v1852 = vpop.f32.mrb[0].mxu0
      %v1853 = vadd.f32 0.0, %v1852
      %v1854 = vpop.f32.mrb[0].mxu0
      %1855 = vmatprep.mubr.bf16.mxu0 0
      %1856 = vmatmul.mubr.bf16.gmra.mrb[0].mxu0 %v1771
      %v1857 = vpop.f32.mrb[0].mxu0
      %v1858 = vadd.f32 0.0, %v1857
      %v1859 = vpop.f32.mrb[0].mxu0
      %v1860 = vpop.f32.mrb[0].mxu0
      %v1861 = vadd.f32 0.0, %v1860
      %v1862 = vpop.f32.mrb[0].mxu0
      %1863 = vmatprep.mubr.bf16.mxu0 0
      %1864 = vmatmul.mubr.bf16.gmra.mrb[0].mxu0 %v1774
      %v1865 = vpop.f32.mrb[0].mxu0
      %v1866 = vadd.f32 0.0, %v1865
      %v1867 = vpop.f32.mrb[0].mxu0
      %v1868 = vpop.f32.mrb[0].mxu0
      %v1869 = vadd.f32 0.0, %v1868
      %v1870 = vpop.f32.mrb[0].mxu0
      %1871 = vmatprep.mubr.bf16.mxu0 0
      %1872 = vmatmul.mubr.bf16.gmra.mrb[0].mxu0 %v1777
      %v1873 = vpop.f32.mrb[0].mxu0
      %v1874 = vadd.f32 0.0, %v1873
      %v1875 = vpop.f32.mrb[0].mxu0
      %v1876 = vpop.f32.mrb[0].mxu0
      %v1877 = vadd.f32 0.0, %v1876
      %v1878 = vpop.f32.mrb[0].mxu0
      %1879 = vmatprep.mubr.bf16.mxu0 0
      %1880 = vmatmul.mubr.bf16.gmra.mrb[0].mxu0 %v1780
      %v1881 = vpop.f32.mrb[0].mxu0
      %v1882 = vadd.f32 0.0, %v1881
      %v1883 = vpop.f32.mrb[0].mxu0
      %v1884 = vpop.f32.mrb[0].mxu0
      %v1885 = vadd.f32 0.0, %v1884
      %v1886 = vpop.f32.mrb[0].mxu0
      %1887 = vmatprep.mubr.bf16.mxu0 0
      %1888 = vmatmul.mubr.bf16.gmra.mrb[0].mxu0 %v1783
      %v1889 = vpop.f32.mrb[0].mxu0
      %v1890 = vadd.f32 0.0, %v1889
      %v1891 = vpop.f32.mrb[0].mxu0
      %v1892 = vpop.f32.mrb[0].mxu0
      %v1893 = vadd.f32 0.0, %v1892
      %v1894 = vpop.f32.mrb[0].mxu0
      %1895 = vmatprep.mubr.bf16.mxu0 0
      %1896 = vmatmul.mubr.bf16.gmra.mrb[0].mxu0 %v1786
      %v1897 = vpop.f32.mrb[0].mxu0
      %v1898 = vadd.f32 0.0, %v1897
      %v1899 = vpop.f32.mrb[0].mxu0
      %v1900 = vpop.f32.mrb[0].mxu0
      %v1901 = vadd.f32 0.0, %v1900
      %v1902 = vpop.f32.mrb[0].mxu0
      %1903 = vdwg.mxu0
      %v1904 = vadd.f32 %v1666, %v1826
      %v1905 = vadd.f32 %v1667, %v1829
      %v1906 = vadd.f32 %v1668, %v1834
      %v1907 = vadd.f32 %v1669, %v1837
      %v1908 = vadd.f32 %v1670, %v1842
      %v1909 = vadd.f32 %v1671, %v1845
      %v1910 = vadd.f32 %v1672, %v1850
      %v1911 = vadd.f32 %v1673, %v1853
      %v1912 = vadd.f32 %v1674, %v1858
      %v1913 = vadd.f32 %v1675, %v1861
      %v1914 = vadd.f32 %v1676, %v1866
      %v1915 = vadd.f32 %v1677, %v1869
      %v1916 = vadd.f32 %v1678, %v1874
      %v1917 = vadd.f32 %v1679, %v1877
      %v1918 = vadd.f32 %v1680, %v1882
      %v1919 = vadd.f32 %v1681, %v1885
      %v1920 = vadd.f32 %v1682, %v1890
      %v1921 = vadd.f32 %v1683, %v1893
      %v1922 = vadd.f32 %v1684, %v1898
      %v1923 = vadd.f32 %v1685, %v1901
      %v1924 = vld [vmem:[%s264 + $0x20] sm:$0xf]
      %v1925 = vld [vmem:[%s264 + $0x24] sm:$0xf]
      %v1926 = vld [vmem:[%s264 + $0x28] sm:$0xf]
      %v1927 = vld [vmem:[%s264 + $0x2c] sm:$0xf]
      %v1928 = vld [vmem:[%s264 + $0x30] sm:$0xf]
      %v1929 = vld [vmem:[%s264 + $0x34] sm:$0xf]
      %v1930 = vld [vmem:[%s264 + $0x38] sm:$0xf]
      %v1931 = vld [vmem:[%s264 + $0x3c] sm:$0xf]
      %v1932 = vld [vmem:[%s264 + $0x40] sm:$0xf]
      %v1933 = vld [vmem:[%s264 + $0x44] sm:$0xf]
      %v1934 = vld [vmem:[%s264 + $0x48] sm:$0xf]
      %v1935 = vld [vmem:[%s264 + $0x4c] sm:$0xf]
      %v1936 = vld [vmem:[%s264 + $0x50] sm:$0xf]
      %v1937 = vld [vmem:[%s264 + $0x54] sm:$0xf]
      %v1938 = vld [vmem:[%s264 + $0x58] sm:$0xf]
      %v1939 = vld [vmem:[%s264 + $0x5c] sm:$0xf]
      %v1940 = vld [vmem:[%s264 + $0x60] sm:$0xf]
      %v1941 = vld [vmem:[%s264 + $0x64] sm:$0xf]
      %v1942 = vld [vmem:[%s264 + $0x68] sm:$0xf]
      %v1943 = vld [vmem:[%s264 + $0x6c] sm:$0xf]
      %v1944 = vld [vmem:[%s264 + $0x70] sm:$0x1]
      %s1945 = scalar_lea.vmem %s269, 14
      %v1946 = vld [vmem:[%s1945] sm:$0x3]
      %v1968 = vunpack.c.l.b16 %v1924
      %v1969 = vunpack.c.l.b16 %v1925
      %v1970 = vunpack.c.l.b16 %v1926
      %v1971 = vunpack.c.l.b16 %v1927
      %v1972 = vunpack.c.l.b16 %v1928
      %v1973 = vunpack.c.l.b16 %v1929
      %v1974 = vunpack.c.l.b16 %v1930
      %v1975 = vunpack.c.l.b16 %v1931
      %v1976 = vunpack.c.l.b16 %v1932
      %v1977 = vunpack.c.l.b16 %v1933
      %v1978 = vunpack.c.l.b16 %v1934
      %v1979 = vunpack.c.l.b16 %v1935
      %v1980 = vunpack.c.l.b16 %v1936
      %v1981 = vunpack.c.l.b16 %v1937
      %v1982 = vunpack.c.l.b16 %v1938
      %v1983 = vunpack.c.l.b16 %v1939
      %v1984 = vunpack.c.l.b16 %v1940
      %v1985 = vunpack.c.l.b16 %v1941
      %v1986 = vunpack.c.l.b16 %v1942
      %v1987 = vunpack.c.l.b16 %v1943
      %v1988 = vunpack.c.l.b16 %v1944
      %v1989 = vpack.c.b16 %v1969, %v1968
      %v1990 = vpack.c.b16 %v1971, %v1970
      %v1991 = vpack.c.b16 %v1973, %v1972
      %v1992 = vpack.c.b16 %v1975, %v1974
      %v1993 = vpack.c.b16 %v1977, %v1976
      %v1994 = vpack.c.b16 %v1979, %v1978
      %v1995 = vpack.c.b16 %v1981, %v1980
      %v1996 = vpack.c.b16 %v1983, %v1982
      %v1997 = vpack.c.b16 %v1985, %v1984
      %v1998 = vpack.c.b16 %v1987, %v1986
      %v1999 = vpack.c.b16 %v1988, %v1988
      %v2001 = vshrl.u32 %v1989, 16
      %v2003 = vshll.u32 %v1989, 16
      %v2005 = vrot.slane %v2003, 1
      %v2006 = vor.u32 %v2001, %v2005
      %v2008 = vshll.u32 %v1990, 16
      %v2010 = vrot.slane %v2008, 1
      %v2011 = vsel %vm366, %v2006, %v2010
      %v2012 = vshrl.u32 %v1990, 16
      %v2014 = vor.u32 %v2012, %v2010
      %v2016 = vshll.u32 %v1991, 16
      %v2018 = vrot.slane %v2016, 1
      %v2019 = vsel %vm366, %v2014, %v2018
      %v2020 = vshrl.u32 %v1991, 16
      %v2022 = vor.u32 %v2020, %v2018
      %v2024 = vshll.u32 %v1992, 16
      %v2026 = vrot.slane %v2024, 1
      %v2027 = vsel %vm366, %v2022, %v2026
      %v2028 = vshrl.u32 %v1992, 16
      %v2030 = vor.u32 %v2028, %v2026
      %v2032 = vshll.u32 %v1993, 16
      %v2034 = vrot.slane %v2032, 1
      %v2035 = vsel %vm366, %v2030, %v2034
      %v2036 = vshrl.u32 %v1993, 16
      %v2038 = vor.u32 %v2036, %v2034
      %v2040 = vshll.u32 %v1994, 16
      %v2042 = vrot.slane %v2040, 1
      %v2043 = vsel %vm366, %v2038, %v2042
      %v2044 = vshrl.u32 %v1994, 16
      %v2046 = vor.u32 %v2044, %v2042
      %v2048 = vshll.u32 %v1995, 16
      %v2050 = vrot.slane %v2048, 1
      %v2051 = vsel %vm366, %v2046, %v2050
      %v2052 = vshrl.u32 %v1995, 16
      %v2054 = vor.u32 %v2052, %v2050
      %v2056 = vshll.u32 %v1996, 16
      %v2058 = vrot.slane %v2056, 1
      %v2059 = vsel %vm366, %v2054, %v2058
      %v2060 = vshrl.u32 %v1996, 16
      %v2062 = vor.u32 %v2060, %v2058
      %v2064 = vshll.u32 %v1997, 16
      %v2066 = vrot.slane %v2064, 1
      %v2067 = vsel %vm366, %v2062, %v2066
      %v2068 = vshrl.u32 %v1997, 16
      %v2070 = vor.u32 %v2068, %v2066
      %v2072 = vshll.u32 %v1998, 16
      %v2074 = vrot.slane %v2072, 1
      %v2075 = vsel %vm366, %v2070, %v2074
      %v2076 = vshrl.u32 %v1998, 16
      %v2078 = vor.u32 %v2076, %v2074
      %v2080 = vshll.u32 %v1999, 16
      %v2082 = vrot.slane %v2080, 1
      %v2083 = vsel %vm366, %v2078, %v2082
      %v2085 = vsel %vm451, %v2011, 0
      %v2088 = vsel %vm451, %v2019, 0
      %v2091 = vsel %vm451, %v2027, 0
      %v2094 = vsel %vm451, %v2035, 0
      %v2097 = vsel %vm451, %v2043, 0
      %v2100 = vsel %vm451, %v2051, 0
      %v2103 = vsel %vm451, %v2059, 0
      %v2106 = vsel %vm451, %v2067, 0
      %v2109 = vsel %vm451, %v2075, 0
      %v2112 = vsel %vm451, %v2083, 0
      %v2115 = vsel %vm482, %v1946, 0
      %2117 = vmatprep.subr.bf16.mxu0 0
      %2118 = vmatpush1.bf16.msra.mxu0 %v2115
      %2119 = vmatprep.subr.bf16.mxu0 0
      %2120 = vmatpush1.bf16.msra.mxu0 0
      %2121 = vmatprep.subr.bf16.mxu0 0
      %2122 = vmatpush1.bf16.msra.mxu0 0
      %2123 = vmatprep.subr.bf16.mxu0 0
      %2124 = vmatpush1.bf16.msra.mxu0 0
      %2125 = vmatprep.subr.bf16.mxu0 0
      %2126 = vmatpush1.bf16.msra.mxu0 0
      %2127 = vmatprep.subr.bf16.mxu0 0
      %2128 = vmatpush1.bf16.msra.mxu0 0
      %2129 = vmatprep.subr.bf16.mxu0 0
      %2130 = vmatpush1.bf16.msra.mxu0 0
      %2131 = vmatprep.subr.bf16.mxu0 0
      %2132 = vmatpush1.bf16.msra.mxu0 0
      %2133 = vmatprep.subr.bf16.mxu0 0
      %2134 = vmatpush1.bf16.msra.mxu0 0
      %2135 = vmatprep.subr.bf16.mxu0 0
      %2136 = vmatpush1.bf16.msra.mxu0 0
      %2137 = vmatprep.subr.bf16.mxu0 0
      %2138 = vmatpush1.bf16.msra.mxu0 0
      %2139 = vmatprep.subr.bf16.mxu0 0
      %2140 = vmatpush1.bf16.msra.mxu0 0
      %2141 = vmatprep.subr.bf16.mxu0 0
      %2142 = vmatpush1.bf16.msra.mxu0 0
      %2143 = vmatprep.subr.bf16.mxu0 0
      %2144 = vmatpush1.bf16.msra.mxu0 0
      %2145 = vmatprep.subr.bf16.mxu0 0
      %2146 = vmatpush1.bf16.msra.mxu0 0
      %2147 = vmatprep.subr.bf16.mxu0 0
      %2148 = vmatpush1.bf16.msra.mxu0 0
      %2149 = vmatprep.mubr.bf16.mxu0 0
      %2150 = vmatmul.mubr.bf16.gmra.mrb[0].mxu0 %v2085
      %v2151 = vpop.f32.mrb[0].mxu0
      %v2152 = vadd.f32 0.0, %v2151
      %v2153 = vpop.f32.mrb[0].mxu0
      %v2154 = vpop.f32.mrb[0].mxu0
      %v2155 = vadd.f32 0.0, %v2154
      %v2156 = vpop.f32.mrb[0].mxu0
      %2157 = vmatprep.mubr.bf16.mxu0 0
      %2158 = vmatmul.mubr.bf16.gmra.mrb[0].mxu0 %v2088
      %v2159 = vpop.f32.mrb[0].mxu0
      %v2160 = vadd.f32 0.0, %v2159
      %v2161 = vpop.f32.mrb[0].mxu0
      %v2162 = vpop.f32.mrb[0].mxu0
      %v2163 = vadd.f32 0.0, %v2162
      %v2164 = vpop.f32.mrb[0].mxu0
      %2165 = vmatprep.mubr.bf16.mxu0 0
      %2166 = vmatmul.mubr.bf16.gmra.mrb[0].mxu0 %v2091
      %v2167 = vpop.f32.mrb[0].mxu0
      %v2168 = vadd.f32 0.0, %v2167
      %v2169 = vpop.f32.mrb[0].mxu0
      %v2170 = vpop.f32.mrb[0].mxu0
      %v2171 = vadd.f32 0.0, %v2170
      %v2172 = vpop.f32.mrb[0].mxu0
      %2173 = vmatprep.mubr.bf16.mxu0 0
      %2174 = vmatmul.mubr.bf16.gmra.mrb[0].mxu0 %v2094
      %v2175 = vpop.f32.mrb[0].mxu0
      %v2176 = vadd.f32 0.0, %v2175
      %v2177 = vpop.f32.mrb[0].mxu0
      %v2178 = vpop.f32.mrb[0].mxu0
      %v2179 = vadd.f32 0.0, %v2178
      %v2180 = vpop.f32.mrb[0].mxu0
      %2181 = vmatprep.mubr.bf16.mxu0 0
      %2182 = vmatmul.mubr.bf16.gmra.mrb[0].mxu0 %v2097
      %v2183 = vpop.f32.mrb[0].mxu0
      %v2184 = vadd.f32 0.0, %v2183
      %v2185 = vpop.f32.mrb[0].mxu0
      %v2186 = vpop.f32.mrb[0].mxu0
      %v2187 = vadd.f32 0.0, %v2186
      %v2188 = vpop.f32.mrb[0].mxu0
      %2189 = vmatprep.mubr.bf16.mxu0 0
      %2190 = vmatmul.mubr.bf16.gmra.mrb[0].mxu0 %v2100
      %v2191 = vpop.f32.mrb[0].mxu0
      %v2192 = vadd.f32 0.0, %v2191
      %v2193 = vpop.f32.mrb[0].mxu0
      %v2194 = vpop.f32.mrb[0].mxu0
      %v2195 = vadd.f32 0.0, %v2194
      %v2196 = vpop.f32.mrb[0].mxu0
      %2197 = vmatprep.mubr.bf16.mxu0 0
      %2198 = vmatmul.mubr.bf16.gmra.mrb[0].mxu0 %v2103
      %v2199 = vpop.f32.mrb[0].mxu0
      %v2200 = vadd.f32 0.0, %v2199
      %v2201 = vpop.f32.mrb[0].mxu0
      %v2202 = vpop.f32.mrb[0].mxu0
      %v2203 = vadd.f32 0.0, %v2202
      %v2204 = vpop.f32.mrb[0].mxu0
      %2205 = vmatprep.mubr.bf16.mxu0 0
      %2206 = vmatmul.mubr.bf16.gmra.mrb[0].mxu0 %v2106
      %v2207 = vpop.f32.mrb[0].mxu0
      %v2208 = vadd.f32 0.0, %v2207
      %v2209 = vpop.f32.mrb[0].mxu0
      %v2210 = vpop.f32.mrb[0].mxu0
      %v2211 = vadd.f32 0.0, %v2210
      %v2212 = vpop.f32.mrb[0].mxu0
      %2213 = vmatprep.mubr.bf16.mxu0 0
      %2214 = vmatmul.mubr.bf16.gmra.mrb[0].mxu0 %v2109
      %v2215 = vpop.f32.mrb[0].mxu0
      %v2216 = vadd.f32 0.0, %v2215
      %v2217 = vpop.f32.mrb[0].mxu0
      %v2218 = vpop.f32.mrb[0].mxu0
      %v2219 = vadd.f32 0.0, %v2218
      %v2220 = vpop.f32.mrb[0].mxu0
      %2221 = vmatprep.mubr.bf16.mxu0 0
      %2222 = vmatmul.mubr.bf16.gmra.mrb[0].mxu0 %v2112
      %v2223 = vpop.f32.mrb[0].mxu0
      %v2224 = vadd.f32 0.0, %v2223
      %v2225 = vpop.f32.mrb[0].mxu0
      %v2226 = vpop.f32.mrb[0].mxu0
      %v2227 = vadd.f32 0.0, %v2226
      %v2228 = vpop.f32.mrb[0].mxu0
      %2229 = vdwg.mxu0
      %v2230 = vadd.f32 %v1904, %v2152
      %v2231 = vadd.f32 %v1905, %v2155
      %v2232 = vadd.f32 %v1906, %v2160
      %v2233 = vadd.f32 %v1907, %v2163
      %v2234 = vadd.f32 %v1908, %v2168
      %v2235 = vadd.f32 %v1909, %v2171
      %v2236 = vadd.f32 %v1910, %v2176
      %v2237 = vadd.f32 %v1911, %v2179
      %v2238 = vadd.f32 %v1912, %v2184
      %v2239 = vadd.f32 %v1913, %v2187
      %v2240 = vadd.f32 %v1914, %v2192
      %v2241 = vadd.f32 %v1915, %v2195
      %v2242 = vadd.f32 %v1916, %v2200
      %v2243 = vadd.f32 %v1917, %v2203
      %v2244 = vadd.f32 %v1918, %v2208
      %v2245 = vadd.f32 %v1919, %v2211
      %v2246 = vadd.f32 %v1920, %v2216
      %v2247 = vadd.f32 %v1921, %v2219
      %v2248 = vadd.f32 %v1922, %v2224
      %v2249 = vadd.f32 %v1923, %v2227
      %v2250 = vld [vmem:[%s264 + $0x20] sm:$0xe]
      %s2251 = scalar_lea.vmem %s269, 16
      %v2252 = vld [vmem:[%s2251] sm:$0x3]
      %v2254 = vunpack.c.l.b16 %v2250
      %v2255 = vpack.c.b16 %v1969, %v2254
      %v2256 = vrot.slane %v2255, 1
      %v2257 = vrot.slane %v1990, 1
      %v2258 = vsel %vm741, %v2256, %v2257
      %v2259 = vrot.slane %v1991, 1
      %v2260 = vsel %vm741, %v2257, %v2259
      %v2261 = vrot.slane %v1992, 1
      %v2262 = vsel %vm741, %v2259, %v2261
      %v2263 = vrot.slane %v1993, 1
      %v2264 = vsel %vm741, %v2261, %v2263
      %v2265 = vrot.slane %v1994, 1
      %v2266 = vsel %vm741, %v2263, %v2265
      %v2267 = vrot.slane %v1995, 1
      %v2268 = vsel %vm741, %v2265, %v2267
      %v2269 = vrot.slane %v1996, 1
      %v2270 = vsel %vm741, %v2267, %v2269
      %v2271 = vrot.slane %v1997, 1
      %v2272 = vsel %vm741, %v2269, %v2271
      %v2273 = vrot.slane %v1998, 1
      %v2274 = vsel %vm741, %v2271, %v2273
      %v2275 = vrot.slane %v1999, 1
      %v2276 = vsel %vm741, %v2273, %v2275
      %v2278 = vsel %vm451, %v2258, 0
      %v2281 = vsel %vm451, %v2260, 0
      %v2284 = vsel %vm451, %v2262, 0
      %v2287 = vsel %vm451, %v2264, 0
      %v2290 = vsel %vm451, %v2266, 0
      %v2293 = vsel %vm451, %v2268, 0
      %v2296 = vsel %vm451, %v2270, 0
      %v2299 = vsel %vm451, %v2272, 0
      %v2302 = vsel %vm451, %v2274, 0
      %v2305 = vsel %vm451, %v2276, 0
      %v2308 = vsel %vm482, %v2252, 0
      %2310 = vmatprep.subr.bf16.mxu0 0
      %2311 = vmatpush1.bf16.msra.mxu0 %v2308
      %2312 = vmatprep.subr.bf16.mxu0 0
      %2313 = vmatpush1.bf16.msra.mxu0 0
      %2314 = vmatprep.subr.bf16.mxu0 0
      %2315 = vmatpush1.bf16.msra.mxu0 0
      %2316 = vmatprep.subr.bf16.mxu0 0
      %2317 = vmatpush1.bf16.msra.mxu0 0
      %2318 = vmatprep.subr.bf16.mxu0 0
      %2319 = vmatpush1.bf16.msra.mxu0 0
      %2320 = vmatprep.subr.bf16.mxu0 0
      %2321 = vmatpush1.bf16.msra.mxu0 0
      %2322 = vmatprep.subr.bf16.mxu0 0
      %2323 = vmatpush1.bf16.msra.mxu0 0
      %2324 = vmatprep.subr.bf16.mxu0 0
      %2325 = vmatpush1.bf16.msra.mxu0 0
      %2326 = vmatprep.subr.bf16.mxu0 0
      %2327 = vmatpush1.bf16.msra.mxu0 0
      %2328 = vmatprep.subr.bf16.mxu0 0
      %2329 = vmatpush1.bf16.msra.mxu0 0
      %2330 = vmatprep.subr.bf16.mxu0 0
      %2331 = vmatpush1.bf16.msra.mxu0 0
      %2332 = vmatprep.subr.bf16.mxu0 0
      %2333 = vmatpush1.bf16.msra.mxu0 0
      %2334 = vmatprep.subr.bf16.mxu0 0
      %2335 = vmatpush1.bf16.msra.mxu0 0
      %2336 = vmatprep.subr.bf16.mxu0 0
      %2337 = vmatpush1.bf16.msra.mxu0 0
      %2338 = vmatprep.subr.bf16.mxu0 0
      %2339 = vmatpush1.bf16.msra.mxu0 0
      %2340 = vmatprep.subr.bf16.mxu0 0
      %2341 = vmatpush1.bf16.msra.mxu0 0
      %2342 = vmatprep.mubr.bf16.mxu0 0
      %2343 = vmatmul.mubr.bf16.gmra.mrb[0].mxu0 %v2278
      %v2344 = vpop.f32.mrb[0].mxu0
      %v2345 = vadd.f32 0.0, %v2344
      %v2346 = vpop.f32.mrb[0].mxu0
      %v2347 = vpop.f32.mrb[0].mxu0
      %v2348 = vadd.f32 0.0, %v2347
      %v2349 = vpop.f32.mrb[0].mxu0
      %2350 = vmatprep.mubr.bf16.mxu0 0
      %2351 = vmatmul.mubr.bf16.gmra.mrb[0].mxu0 %v2281
      %v2352 = vpop.f32.mrb[0].mxu0
      %v2353 = vadd.f32 0.0, %v2352
      %v2354 = vpop.f32.mrb[0].mxu0
      %v2355 = vpop.f32.mrb[0].mxu0
      %v2356 = vadd.f32 0.0, %v2355
      %v2357 = vpop.f32.mrb[0].mxu0
      %2358 = vmatprep.mubr.bf16.mxu0 0
      %2359 = vmatmul.mubr.bf16.gmra.mrb[0].mxu0 %v2284
      %v2360 = vpop.f32.mrb[0].mxu0
      %v2361 = vadd.f32 0.0, %v2360
      %v2362 = vpop.f32.mrb[0].mxu0
      %v2363 = vpop.f32.mrb[0].mxu0
      %v2364 = vadd.f32 0.0, %v2363
      %v2365 = vpop.f32.mrb[0].mxu0
      %2366 = vmatprep.mubr.bf16.mxu0 0
      %2367 = vmatmul.mubr.bf16.gmra.mrb[0].mxu0 %v2287
      %v2368 = vpop.f32.mrb[0].mxu0
      %v2369 = vadd.f32 0.0, %v2368
      %v2370 = vpop.f32.mrb[0].mxu0
      %v2371 = vpop.f32.mrb[0].mxu0
      %v2372 = vadd.f32 0.0, %v2371
      %v2373 = vpop.f32.mrb[0].mxu0
      %2374 = vmatprep.mubr.bf16.mxu0 0
      %2375 = vmatmul.mubr.bf16.gmra.mrb[0].mxu0 %v2290
      %v2376 = vpop.f32.mrb[0].mxu0
      %v2377 = vadd.f32 0.0, %v2376
      %v2378 = vpop.f32.mrb[0].mxu0
      %v2379 = vpop.f32.mrb[0].mxu0
      %v2380 = vadd.f32 0.0, %v2379
      %v2381 = vpop.f32.mrb[0].mxu0
      %2382 = vmatprep.mubr.bf16.mxu0 0
      %2383 = vmatmul.mubr.bf16.gmra.mrb[0].mxu0 %v2293
      %v2384 = vpop.f32.mrb[0].mxu0
      %v2385 = vadd.f32 0.0, %v2384
      %v2386 = vpop.f32.mrb[0].mxu0
      %v2387 = vpop.f32.mrb[0].mxu0
      %v2388 = vadd.f32 0.0, %v2387
      %v2389 = vpop.f32.mrb[0].mxu0
      %2390 = vmatprep.mubr.bf16.mxu0 0
      %2391 = vmatmul.mubr.bf16.gmra.mrb[0].mxu0 %v2296
      %v2392 = vpop.f32.mrb[0].mxu0
      %v2393 = vadd.f32 0.0, %v2392
      %v2394 = vpop.f32.mrb[0].mxu0
      %v2395 = vpop.f32.mrb[0].mxu0
      %v2396 = vadd.f32 0.0, %v2395
      %v2397 = vpop.f32.mrb[0].mxu0
      %2398 = vmatprep.mubr.bf16.mxu0 0
      %2399 = vmatmul.mubr.bf16.gmra.mrb[0].mxu0 %v2299
      %v2400 = vpop.f32.mrb[0].mxu0
      %v2401 = vadd.f32 0.0, %v2400
      %v2402 = vpop.f32.mrb[0].mxu0
      %v2403 = vpop.f32.mrb[0].mxu0
      %v2404 = vadd.f32 0.0, %v2403
      %v2405 = vpop.f32.mrb[0].mxu0
      %2406 = vmatprep.mubr.bf16.mxu0 0
      %2407 = vmatmul.mubr.bf16.gmra.mrb[0].mxu0 %v2302
      %v2408 = vpop.f32.mrb[0].mxu0
      %v2409 = vadd.f32 0.0, %v2408
      %v2410 = vpop.f32.mrb[0].mxu0
      %v2411 = vpop.f32.mrb[0].mxu0
      %v2412 = vadd.f32 0.0, %v2411
      %v2413 = vpop.f32.mrb[0].mxu0
      %2414 = vmatprep.mubr.bf16.mxu0 0
      %2415 = vmatmul.mubr.bf16.gmra.mrb[0].mxu0 %v2305
      %v2416 = vpop.f32.mrb[0].mxu0
      %v2417 = vadd.f32 0.0, %v2416
      %v2418 = vpop.f32.mrb[0].mxu0
      %v2419 = vpop.f32.mrb[0].mxu0
      %v2420 = vadd.f32 0.0, %v2419
      %v2421 = vpop.f32.mrb[0].mxu0
      %2422 = vdwg.mxu0
      %v2423 = vadd.f32 %v2230, %v2345
      %v2424 = vadd.f32 %v2231, %v2348
      %v2425 = vadd.f32 %v2232, %v2353
      %v2426 = vadd.f32 %v2233, %v2356
      %v2427 = vadd.f32 %v2234, %v2361
      %v2428 = vadd.f32 %v2235, %v2364
      %v2429 = vadd.f32 %v2236, %v2369
      %v2430 = vadd.f32 %v2237, %v2372
      %v2431 = vadd.f32 %v2238, %v2377
      %v2432 = vadd.f32 %v2239, %v2380
      %v2433 = vadd.f32 %v2240, %v2385
      %v2434 = vadd.f32 %v2241, %v2388
      %v2435 = vadd.f32 %v2242, %v2393
      %v2436 = vadd.f32 %v2243, %v2396
      %v2437 = vadd.f32 %v2244, %v2401
      %v2438 = vadd.f32 %v2245, %v2404
      %v2439 = vadd.f32 %v2246, %v2409
      %v2440 = vadd.f32 %v2247, %v2412
      %v2441 = vadd.f32 %v2248, %v2417
      %v2442 = vadd.f32 %v2249, %v2420
      %v2443 = vld [vmem:[%s278] sm:$0xff]
      %v2444 = vld [vmem:[%s278 + $0x8] sm:$0xff]
      %v2445 = vld [vmem:[%s278 + $0x10] sm:$0xff]
      %v2446 = vld [vmem:[%s278 + $0x18] sm:$0xff]
      %v2447 = vld [vmem:[%s278 + $0x20] sm:$0xff]
      %v2448 = vld [vmem:[%s278 + $0x28] sm:$0xff]
      %v2449 = vld [vmem:[%s278 + $0x30] sm:$0xff]
      %v2450 = vld [vmem:[%s278 + $0x38] sm:$0xff]
      %v2451 = vld [vmem:[%s278 + $0x40] sm:$0xff]
      %v2452 = vld [vmem:[%s278 + $0x48] sm:$0xff]
      %v2453 = vld [vmem:[%s278 + $0x50] sm:$0xff]
      %v2454 = vld [vmem:[%s278 + $0x58] sm:$0xff]
      %v2455 = vld [vmem:[%s278 + $0x60] sm:$0xff]
      %v2456 = vld [vmem:[%s278 + $0x68] sm:$0xff]
      %v2457 = vld [vmem:[%s278 + $0x70] sm:$0xff]
      %v2458 = vld [vmem:[%s278 + $0x78] sm:$0xff]
      %v2459 = vld [vmem:[%s278 + $0x80] sm:$0xff]
      %v2460 = vld [vmem:[%s278 + $0x88] sm:$0xff]
      %v2461 = vld [vmem:[%s278 + $0x90] sm:$0xff]
      %v2462 = vld [vmem:[%s278 + $0x98] sm:$0xff]
      %2464 = vset.pattern.permute.xlu0 0
      %2465 = vperm.xlu0 %2464, %v2443
      %v2466 = vpop.permute.xlu0 %2465
      %2469 = vset.pattern.permute.xlu0 0
      %2470 = vperm.xlu0 %2469, %v2444
      %v2471 = vpop.permute.xlu0 %2470
      %2474 = vset.pattern.permute.xlu0 0
      %2475 = vperm.xlu0 %2474, %v2445
      %v2476 = vpop.permute.xlu0 %2475
      %2479 = vset.pattern.permute.xlu0 0
      %2480 = vperm.xlu0 %2479, %v2446
      %v2481 = vpop.permute.xlu0 %2480
      %2484 = vset.pattern.permute.xlu0 0
      %2485 = vperm.xlu0 %2484, %v2447
      %v2486 = vpop.permute.xlu0 %2485
      %2489 = vset.pattern.permute.xlu0 0
      %2490 = vperm.xlu0 %2489, %v2448
      %v2491 = vpop.permute.xlu0 %2490
      %2494 = vset.pattern.permute.xlu0 0
      %2495 = vperm.xlu0 %2494, %v2449
      %v2496 = vpop.permute.xlu0 %2495
      %2499 = vset.pattern.permute.xlu0 0
      %2500 = vperm.xlu0 %2499, %v2450
      %v2501 = vpop.permute.xlu0 %2500
      %2504 = vset.pattern.permute.xlu0 0
      %2505 = vperm.xlu0 %2504, %v2451
      %v2506 = vpop.permute.xlu0 %2505
      %2509 = vset.pattern.permute.xlu0 0
      %2510 = vperm.xlu0 %2509, %v2452
      %v2511 = vpop.permute.xlu0 %2510
      %2514 = vset.pattern.permute.xlu0 0
      %2515 = vperm.xlu0 %2514, %v2453
      %v2516 = vpop.permute.xlu0 %2515
      %2519 = vset.pattern.permute.xlu0 0
      %2520 = vperm.xlu0 %2519, %v2454
      %v2521 = vpop.permute.xlu0 %2520
      %2524 = vset.pattern.permute.xlu0 0
      %2525 = vperm.xlu0 %2524, %v2455
      %v2526 = vpop.permute.xlu0 %2525
      %2529 = vset.pattern.permute.xlu0 0
      %2530 = vperm.xlu0 %2529, %v2456
      %v2531 = vpop.permute.xlu0 %2530
      %2534 = vset.pattern.permute.xlu0 0
      %2535 = vperm.xlu0 %2534, %v2457
      %v2536 = vpop.permute.xlu0 %2535
      %2539 = vset.pattern.permute.xlu0 0
      %2540 = vperm.xlu0 %2539, %v2458
      %v2541 = vpop.permute.xlu0 %2540
      %2544 = vset.pattern.permute.xlu0 0
      %2545 = vperm.xlu0 %2544, %v2459
      %v2546 = vpop.permute.xlu0 %2545
      %2549 = vset.pattern.permute.xlu0 0
      %2550 = vperm.xlu0 %2549, %v2460
      %v2551 = vpop.permute.xlu0 %2550
      %2554 = vset.pattern.permute.xlu0 0
      %2555 = vperm.xlu0 %2554, %v2461
      %v2556 = vpop.permute.xlu0 %2555
      %2559 = vset.pattern.permute.xlu0 0
      %2560 = vperm.xlu0 %2559, %v2462
      %v2561 = vpop.permute.xlu0 %2560
      %v2563 = vadd.f32 %v2423, %v2466
      %v2564 = vadd.f32 %v2424, %v2471
      %v2565 = vadd.f32 %v2425, %v2476
      %v2566 = vadd.f32 %v2426, %v2481
      %v2567 = vadd.f32 %v2427, %v2486
      %v2568 = vadd.f32 %v2428, %v2491
      %v2569 = vadd.f32 %v2429, %v2496
      %v2570 = vadd.f32 %v2430, %v2501
      %v2571 = vadd.f32 %v2431, %v2506
      %v2572 = vadd.f32 %v2432, %v2511
      %v2573 = vadd.f32 %v2433, %v2516
      %v2574 = vadd.f32 %v2434, %v2521
      %v2575 = vadd.f32 %v2435, %v2526
      %v2576 = vadd.f32 %v2436, %v2531
      %v2577 = vadd.f32 %v2437, %v2536
      %v2578 = vadd.f32 %v2438, %v2541
      %v2579 = vadd.f32 %v2439, %v2546
      %v2580 = vadd.f32 %v2440, %v2551
      %v2581 = vadd.f32 %v2441, %v2556
      %v2582 = vadd.f32 %v2442, %v2561
      %v2583 = vld [vmem:[%s3] sm:$0x1]
      %v2585 = vlaneseq
      %v2586 = vshrl.u32 %v2585, 7
      %v2587 = vsub.s32 0, %v2586
      %v2588 = vrot.slane %v2583, %v2587
      %v2590 = vadd.f32 %v2563, %v2588
      %v2591 = vadd.f32 %v2564, %v2588
      %v2592 = vadd.f32 %v2565, %v2588
      %v2593 = vadd.f32 %v2566, %v2588
      %v2594 = vadd.f32 %v2567, %v2588
      %v2595 = vadd.f32 %v2568, %v2588
      %v2596 = vadd.f32 %v2569, %v2588
      %v2597 = vadd.f32 %v2570, %v2588
      %v2598 = vadd.f32 %v2571, %v2588
      %v2599 = vadd.f32 %v2572, %v2588
      %v2600 = vadd.f32 %v2573, %v2588
      %v2601 = vadd.f32 %v2574, %v2588
      %v2602 = vadd.f32 %v2575, %v2588
      %v2603 = vadd.f32 %v2576, %v2588
      %v2604 = vadd.f32 %v2577, %v2588
      %v2605 = vadd.f32 %v2578, %v2588
      %v2606 = vadd.f32 %v2579, %v2588
      %v2607 = vadd.f32 %v2580, %v2588
      %v2608 = vadd.f32 %v2581, %v2588
      %v2609 = vadd.f32 %v2582, %v2588
      %vm2610 = vcmp.ge.f32.partialorder %v2590, 0.0
      %vm2611 = vcmp.ge.f32.partialorder %v2591, 0.0
      %vm2612 = vcmp.ge.f32.partialorder %v2592, 0.0
      %vm2613 = vcmp.ge.f32.partialorder %v2593, 0.0
      %vm2614 = vcmp.ge.f32.partialorder %v2594, 0.0
      %vm2615 = vcmp.ge.f32.partialorder %v2595, 0.0
      %vm2616 = vcmp.ge.f32.partialorder %v2596, 0.0
      %vm2617 = vcmp.ge.f32.partialorder %v2597, 0.0
      %vm2618 = vcmp.ge.f32.partialorder %v2598, 0.0
      %vm2619 = vcmp.ge.f32.partialorder %v2599, 0.0
      %vm2620 = vcmp.ge.f32.partialorder %v2600, 0.0
      %vm2621 = vcmp.ge.f32.partialorder %v2601, 0.0
      %vm2622 = vcmp.ge.f32.partialorder %v2602, 0.0
      %vm2623 = vcmp.ge.f32.partialorder %v2603, 0.0
      %vm2624 = vcmp.ge.f32.partialorder %v2604, 0.0
      %vm2625 = vcmp.ge.f32.partialorder %v2605, 0.0
      %vm2626 = vcmp.ge.f32.partialorder %v2606, 0.0
      %vm2627 = vcmp.ge.f32.partialorder %v2607, 0.0
      %vm2628 = vcmp.ge.f32.partialorder %v2608, 0.0
      %vm2629 = vcmp.ge.f32.partialorder %v2609, 0.0
      %v2630 = vmul.f32 %v2590, 0.2
      %v2631 = vmul.f32 %v2591, 0.2
      %v2632 = vmul.f32 %v2592, 0.2
      %v2633 = vmul.f32 %v2593, 0.2
      %v2634 = vmul.f32 %v2594, 0.2
      %v2635 = vmul.f32 %v2595, 0.2
      %v2636 = vmul.f32 %v2596, 0.2
      %v2637 = vmul.f32 %v2597, 0.2
      %v2638 = vmul.f32 %v2598, 0.2
      %v2639 = vmul.f32 %v2599, 0.2
      %v2640 = vmul.f32 %v2600, 0.2
      %v2641 = vmul.f32 %v2601, 0.2
      %v2642 = vmul.f32 %v2602, 0.2
      %v2643 = vmul.f32 %v2603, 0.2
      %v2644 = vmul.f32 %v2604, 0.2
      %v2645 = vmul.f32 %v2605, 0.2
      %v2646 = vmul.f32 %v2606, 0.2
      %v2647 = vmul.f32 %v2607, 0.2
      %v2648 = vmul.f32 %v2608, 0.2
      %v2649 = vmul.f32 %v2609, 0.2
      %v2650 = vsel %vm2610, %v2590, %v2630
      %v2651 = vsel %vm2611, %v2591, %v2631
      %v2652 = vsel %vm2612, %v2592, %v2632
      %v2653 = vsel %vm2613, %v2593, %v2633
      %v2654 = vsel %vm2614, %v2594, %v2634
      %v2655 = vsel %vm2615, %v2595, %v2635
      %v2656 = vsel %vm2616, %v2596, %v2636
      %v2657 = vsel %vm2617, %v2597, %v2637
      %v2658 = vsel %vm2618, %v2598, %v2638
      %v2659 = vsel %vm2619, %v2599, %v2639
      %v2660 = vsel %vm2620, %v2600, %v2640
      %v2661 = vsel %vm2621, %v2601, %v2641
      %v2662 = vsel %vm2622, %v2602, %v2642
      %v2663 = vsel %vm2623, %v2603, %v2643
      %v2664 = vsel %vm2624, %v2604, %v2644
      %v2665 = vsel %vm2625, %v2605, %v2645
      %v2666 = vsel %vm2626, %v2606, %v2646
      %v2667 = vsel %vm2627, %v2607, %v2647
      %v2668 = vsel %vm2628, %v2608, %v2648
      %v2669 = vsel %vm2629, %v2609, %v2649
      %v2670 = vmul.f32 %v2650, 1.4142135
      %v2671 = vmul.f32 %v2651, 1.4142135
      %v2672 = vmul.f32 %v2652, 1.4142135
      %v2673 = vmul.f32 %v2653, 1.4142135
      %v2674 = vmul.f32 %v2654, 1.4142135
      %v2675 = vmul.f32 %v2655, 1.4142135
      %v2676 = vmul.f32 %v2656, 1.4142135
      %v2677 = vmul.f32 %v2657, 1.4142135
      %v2678 = vmul.f32 %v2658, 1.4142135
      %v2679 = vmul.f32 %v2659, 1.4142135
      %v2680 = vmul.f32 %v2660, 1.4142135
      %v2681 = vmul.f32 %v2661, 1.4142135
      %v2682 = vmul.f32 %v2662, 1.4142135
      %v2683 = vmul.f32 %v2663, 1.4142135
      %v2684 = vmul.f32 %v2664, 1.4142135
      %v2685 = vmul.f32 %v2665, 1.4142135
      %v2686 = vmul.f32 %v2666, 1.4142135
      %v2687 = vmul.f32 %v2667, 1.4142135
      %v2688 = vmul.f32 %v2668, 1.4142135
      %v2689 = vmul.f32 %v2669, 1.4142135
      %vm2690 = vcmask 64512
      %2691 = vst.msk [vmem:[%s287] sm:$0xff] %vm2690, %v2670
      %2692 = vst.msk [vmem:[%s287 + $0x8] sm:$0xff] %vm2690, %v2671
      %2693 = vst.msk [vmem:[%s287 + $0x10] sm:$0xff] %vm2690, %v2672
      %2694 = vst.msk [vmem:[%s287 + $0x18] sm:$0xff] %vm2690, %v2673
      %2695 = vst.msk [vmem:[%s287 + $0x20] sm:$0xff] %vm2690, %v2674
      %2696 = vst.msk [vmem:[%s287 + $0x28] sm:$0xff] %vm2690, %v2675
      %2697 = vst.msk [vmem:[%s287 + $0x30] sm:$0xff] %vm2690, %v2676
      %2698 = vst.msk [vmem:[%s287 + $0x38] sm:$0xff] %vm2690, %v2677
      %2699 = vst.msk [vmem:[%s287 + $0x40] sm:$0xff] %vm2690, %v2678
      %2700 = vst.msk [vmem:[%s287 + $0x48] sm:$0xff] %vm2690, %v2679
      %2701 = vst.msk [vmem:[%s287 + $0x50] sm:$0xff] %vm2690, %v2680
      %2702 = vst.msk [vmem:[%s287 + $0x58] sm:$0xff] %vm2690, %v2681
      %2703 = vst.msk [vmem:[%s287 + $0x60] sm:$0xff] %vm2690, %v2682
      %2704 = vst.msk [vmem:[%s287 + $0x68] sm:$0xff] %vm2690, %v2683
      %2705 = vst.msk [vmem:[%s287 + $0x70] sm:$0xff] %vm2690, %v2684
      %2706 = vst.msk [vmem:[%s287 + $0x78] sm:$0xff] %vm2690, %v2685
      %2707 = vst.msk [vmem:[%s287 + $0x80] sm:$0xff] %vm2690, %v2686
      %2708 = vst.msk [vmem:[%s287 + $0x88] sm:$0xff] %vm2690, %v2687
      %2709 = vst.msk [vmem:[%s287 + $0x90] sm:$0xff] %vm2690, %v2688
      %2710 = vst.msk [vmem:[%s287 + $0x98] sm:$0xff] %vm2690, %v2689
      %p2711 = scmp.lt.s32.totalorder %s19, 1
      %s2712 = scalar_select %p2711, %s19, 1
      %p2713 = scmp.lt.s32.totalorder %s20, 3
      %s2714 = scalar_select %p2713, %s20, 3
      %s2715 = smul.addr %s2714, 20
      %s2716 = smul.addr %s2712, 80
      %s2717 = sadd.s32 %s2715, %s2716
      %s2718 = smul.addr %s2717, 8
      %s2719 = scalar_lea.vmem %s4, %s2718
      // Predicated region
      $region37: #{tpu_custom_call.1} parent=35 // pred_check
        %p2720 = pneg %p150
      $region38: #{tpu_custom_call.1} parent=35 // pred_check_branch
        %2722 = sbr.rel (%p2720) target = $region40
      $region39: #{tpu_custom_call.1} parent=35 // pred_region
        _
      $region40: #{tpu_custom_call.1} parent=35 // pred_fallthru
        _
    $region36: #{tpu_custom_call.1} parent=5 // pred_fallthru
      _
    %p2723 = scmp.le.s32.totalorder 2, %s10
    // Predicated region
    $region41: #{tpu_custom_call.1} parent=5 // pred_check
      %p2724 = pneg %p2723
    $region42: #{tpu_custom_call.1} parent=5 // pred_check_branch
      %2726 = sbr.rel (%p2724) target = $region44
    $region43: #{tpu_custom_call.1} parent=5 // pred_region
      %s2727 = ssub.s32 %s10, 2
      // Predicated region
      $region45: #{tpu_custom_call.1} parent=43 // pred_check
        %p2728 = pneg %p156
      $region46: #{tpu_custom_call.1} parent=43 // pred_check_branch
        %2730 = sbr.rel (%p2728) target = $region48
      $region47: #{tpu_custom_call.1} parent=43 // pred_region
        %p2731 = scmp.lt.s32.totalorder %s21, 1
        %s2732 = scalar_select %p2731, %s21, 1
        %p2733 = scmp.lt.s32.totalorder %s22, 3
        %s2734 = scalar_select %p2733, %s22, 3
        %s2735 = smul.addr %s2734, 20
        %s2736 = smul.addr %s2732, 80
        %s2737 = sadd.s32 %s2735, %s2736
        %s2738 = smul.addr %s2737, 8
        %s2739 = scalar_lea.vmem %s4, %s2738
      $region48: #{tpu_custom_call.1} parent=43 // pred_fallthru
        _
    $region44: #{tpu_custom_call.1} parent=5 // pred_fallthru
      _
  $region6: #{tpu_custom_call.1} parent=0 // loop_footer
    %s14 = sadd.s32 1, %s10
  $region7: #{tpu_custom_call.1} parent=0 // loop_footer_branch
    %9 = sbr.rel target = $region3
  $region8: #{tpu_custom_call.1} parent=0 // loop_exit
    _

</llo_original>
